<compile_context>
chip_gen: v7x
topology: tpu7x:2x2x1
jax: 0.10.0
libtpu: 0.0.40
codegen_flags: <defaults>
</compile_context>

<pallas_src>
import functools

import jax
import jax.numpy as jnp
from jax import lax
from jax.experimental import pallas as pl
from jax.experimental.pallas import tpu as pltpu
import numpy as np

EPS = 1e-5  # PyTorch GroupNorm default eps


def _vmem_capacity_bytes() -> int:
    """Per-core VMEM capacity; conservative 64 MiB (v7x) if the query fails."""
    try:
        cap = getattr(pltpu.get_tpu_info(), "vmem_capacity_bytes", None)
        if cap:
            return int(cap)
    except Exception:
        pass
    return 64 * 2**20


def resnet_block_kernel(x_ref, m_ref,
                        w1_ref, b1_ref, g1_ref, be1_ref,
                        w2_ref, b2_ref, g2_ref, be2_ref,
                        pc_ref,
                        o_ref, xpad_ref):
    C, N = x_ref.shape                            # (C, N): channels→sublanes, N→lanes
    x0 = x_ref[...].astype(jnp.float32)
    mask = m_ref[...].astype(jnp.float32)         # (1, N), sublane-broadcast below
    Pc = pc_ref[...]                              # (C, C) f32 group-averaging matrix

    # Zero the conv halo columns once per grid step; the body only ever writes
    # columns [1, N], so they stay zero across both Block calls.
    xpad_ref[:, 0:1] = jnp.zeros((C, 1), xpad_ref.dtype)
    xpad_ref[:, N + 1:N + 2] = jnp.zeros((C, 1), xpad_ref.dtype)

    def block(x, w_ref, b_ref, g_ref, be_ref):
        # masked_fill(~mask, 0), cast to the MXU operand dtype, and place into
        # the zero-padded scratch; the three conv taps are then static slice
        # loads (no (3C, N) stacked copy is ever materialized).
        xpad_ref[:, 1:N + 1] = (x * mask).astype(xpad_ref.dtype)
        h = jnp.dot(w_ref[1], xpad_ref[:, 1:N + 1],            # centre tap x[n]
                    preferred_element_type=jnp.float32)
        h = h + jnp.dot(w_ref[0], xpad_ref[:, 0:N],            # left tap  x[n-1]
                        preferred_element_type=jnp.float32)
        h = h + jnp.dot(w_ref[2], xpad_ref[:, 2:N + 2],        # right tap x[n+1]
                        preferred_element_type=jnp.float32)
        h = (h + b_ref[...]) * mask                            # (C, N) f32

        # GroupNorm (stats include the masked-out zeros — same as PyTorch's
        # mask-then-plain-GroupNorm).  Centered two-pass variance.
        s1 = jnp.sum(h, axis=1, keepdims=True)                       # (C, 1)
        mean = jnp.dot(Pc, s1, preferred_element_type=jnp.float32)   # (C, 1)
        d = h - mean
        s2 = jnp.sum(d * d, axis=1, keepdims=True)                   # (C, 1)
        var = jnp.dot(Pc, s2, preferred_element_type=jnp.float32)    # (C, 1)
        hn = d * lax.rsqrt(var + EPS) * g_ref[...] + be_ref[...]
        return hn * jax.nn.sigmoid(hn)                               # SiLU

    h = block(x0, w1_ref, b1_ref, g1_ref, be1_ref)
    h = block(h, w2_ref, b2_ref, g2_ref, be2_ref)
    o_ref[...] = (h + x0).astype(o_ref.dtype)


@functools.partial(jax.jit, static_argnames=("groups", "mxu_dtype"))
def resnet_block(x_ncw, mask_b1n, params, *, groups=8, mxu_dtype=jnp.bfloat16):
    """x_ncw: (B, C, N) exactly like the PyTorch module.  mask_b1n: (B, 1, N) bool."""
    B, C, N = x_ncw.shape
    G = groups
    if C % G:
        raise ValueError(f"channels {C} not divisible by groups {G}")
    mxu_dtype = np.dtype(mxu_dtype)

    # Conv taps: PyTorch (C_out, C_in, 3) -> (3, C_out, C_in) in MXU operand dtype.
    taps = lambda w: jnp.transpose(w, (2, 0, 1)).astype(mxu_dtype)
    col = lambda p: p.reshape(C, 1).astype(jnp.float32)

    w1, w2 = taps(params["conv1_w"]), taps(params["conv2_w"])
    b1, g1, be1 = col(params["conv1_b"]), col(params["gn1_w"]), col(params["gn1_b"])
    b2, g2, be2 = col(params["conv2_b"]), col(params["gn2_w"]), col(params["gn2_b"])

    # Group-averaging matrix with 1/count folded in:
    #   Pc[i, j] = 1 / (N * C/G) if channels i and j share a group, else 0.
    # A single (C, C) @ (C, 1) matmul then yields the per-channel group mean.
    gid = jnp.arange(C, dtype=jnp.int32) // (C // G)
    Pc = (gid[:, None] == gid[None, :]).astype(jnp.float32) / float(N * (C // G))

    # Mask stays (B, 1, N): no (B, C, N) broadcast materialization in HBM.
    mask_f = mask_b1n.astype(jnp.float32)

    # ---- honest per-grid-step VMEM accounting --------------------------------
    xb = x_ncw.dtype.itemsize
    mb = mxu_dtype.itemsize
    io_blocks = 2 * C * N * xb + 2 * C * N * xb + 2 * N * 4      # x, out (dbl-buf), mask
    param_bytes = 2 * 3 * C * C * mb + 6 * C * 4 + C * C * 4     # taps x2, vecs, Pc (single-buf)
    scratch = C * (N + 2) * mb                                   # zero-padded conv window
    live_tmp = 6 * C * N * 4 + 2 * C * N * mb                    # x0, h, d, hn, sigmoid, ... (generous)
    est = io_blocks + param_bytes + scratch + live_tmp

    cap = _vmem_capacity_bytes()
    if est > int(0.8 * cap):
        raise ValueError(
            f"ResnetBlock Pallas kernel: per-step VMEM estimate {est / 2**20:.1f} MiB "
            f"exceeds 80% of VMEM capacity {cap / 2**20:.1f} MiB for (C={C}, N={N}); "
            "an N-tiled two-pass GroupNorm variant is required for this shape.")
    vmem_limit = int(min(cap, max(32 * 2**20, int(est * 1.25))))

    per_b = lambda b: (b, 0, 0)
    c2 = lambda b: (0, 0)
    c3 = lambda b: (0, 0, 0)
    single = pl.Buffered(buffer_count=1)      # params never change across grid steps

    out = pl.pallas_call(
        resnet_block_kernel,
        out_shape=jax.ShapeDtypeStruct((B, C, N), x_ncw.dtype),
        grid=(B,),
        in_specs=[
            pl.BlockSpec((None, C, N), per_b),                     # x (native NCW)
            pl.BlockSpec((None, 1, N), per_b),                     # mask (B, 1, N)
            pl.BlockSpec((3, C, C), c3, pipeline_mode=single),     # conv1 taps
            pl.BlockSpec((C, 1), c2, pipeline_mode=single),        # conv1 bias
            pl.BlockSpec((C, 1), c2, pipeline_mode=single),        # gn1 gamma
            pl.BlockSpec((C, 1), c2, pipeline_mode=single),        # gn1 beta
            pl.BlockSpec((3, C, C), c3, pipeline_mode=single),     # conv2 taps
            pl.BlockSpec((C, 1), c2, pipeline_mode=single),        # conv2 bias
            pl.BlockSpec((C, 1), c2, pipeline_mode=single),        # gn2 gamma
            pl.BlockSpec((C, 1), c2, pipeline_mode=single),        # gn2 beta
            pl.BlockSpec((C, C), c2, pipeline_mode=single),        # group-averaging Pc
        ],
        out_specs=pl.BlockSpec((None, C, N), per_b),
        scratch_shapes=[pltpu.VMEM((C, N + 2), mxu_dtype)],
        compiler_params=pltpu.CompilerParams(
            dimension_semantics=("parallel",),
            vmem_limit_bytes=vmem_limit),
    )(x_ncw, mask_f, w1, b1, g1, be1, w2, b2, g2, be2, Pc)

    return out  # (B, C, N), same layout as the PyTorch module


# ---------------- pure-JAX reference (mirrors the PyTorch module) ----------------
def _ref_block(x, mask, w, b, gamma, beta, groups):
    xm = x * mask
    y = lax.conv_general_dilated(
        xm, w, window_strides=(1,), padding=((1, 1),),
        dimension_numbers=("NCH", "OIH", "NCH")) + b[None, :, None]
    y = y * mask
    B, C, N = y.shape
    yg = y.reshape(B, groups, C // groups, N)
    mean = yg.mean(axis=(2, 3), keepdims=True)
    var = yg.var(axis=(2, 3), keepdims=True)
    yn = (yg - mean) / jnp.sqrt(var + EPS)
    yn = yn.reshape(B, C, N) * gamma[None, :, None] + beta[None, :, None]
    return yn * jax.nn.sigmoid(yn)


def _ref_resnet_block(x, mask, params, groups):
    h = _ref_block(x, mask, params["conv1_w"], params["conv1_b"],
                   params["gn1_w"], params["gn1_b"], groups)
    h = _ref_block(h, mask, params["conv2_w"], params["conv2_b"],
                   params["gn2_w"], params["gn2_b"], groups)
    return h + x


if __name__ == "__main__":
    def make_case(key, B, C, N):
        ks = jax.random.split(key, 8)
        x = jax.random.normal(ks[0], (B, C, N), dtype=jnp.float32)
        lengths = jnp.array([N, max(1, N - 5)][:B], dtype=jnp.int32)
        mask = (jnp.arange(N)[None, :] < lengths[:, None])[:, None, :]   # (B,1,N) bool
        params = {
            "conv1_w": 0.1 * jax.random.normal(ks[1], (C, C, 3), dtype=jnp.float32),
            "conv1_b": 0.05 * jax.random.normal(ks[2], (C,), dtype=jnp.float32),
            "gn1_w": 1.0 + 0.1 * jax.random.normal(ks[3], (C,), dtype=jnp.float32),
            "gn1_b": 0.1 * jax.random.normal(ks[4], (C,), dtype=jnp.float32),
            "conv2_w": 0.1 * jax.random.normal(ks[5], (C, C, 3), dtype=jnp.float32),
            "conv2_b": 0.05 * jax.random.normal(ks[6], (C,), dtype=jnp.float32),
            "gn2_w": 1.0 + 0.1 * jax.random.normal(ks[7], (C,), dtype=jnp.float32),
            "gn2_b": jnp.zeros((C,), dtype=jnp.float32),
        }
        return x, mask, params

    key = jax.random.PRNGKey(0)
    k1, k2 = jax.random.split(key)

    # case 1: small toy shape; case 2: lane-aligned N to exercise multi-vreg rows
    for case_key, (B, C, N, G) in [(k1, (2, 32, 16, 8)), (k2, (2, 64, 256, 8))]:
        x, mask, params = make_case(case_key, B, C, N)
        ref = _ref_resnet_block(x, mask.astype(jnp.float32), params, G)

        # exact-fidelity path: f32 MXU operands
        out_f32 = jax.block_until_ready(
            resnet_block(x, mask, params, groups=G, mxu_dtype=jnp.float32))
        np.testing.assert_allclose(np.asarray(out_f32), np.asarray(ref),
                                   rtol=2e-4, atol=2e-4)

        # fast path: bf16 MXU operands, f32 accumulation & elementwise math
        out_bf16 = jax.block_until_ready(
            resnet_block(x, mask, params, groups=G, mxu_dtype=jnp.bfloat16))
        np.testing.assert_allclose(np.asarray(out_bf16), np.asarray(ref),
                                   rtol=4e-2, atol=4e-2)

    print("KERNEL_OK")
</pallas_src>

<mosaic_0001>
module attributes {stable_mosaic.version = 11 : i64} {
  func.func @resnet_block_kernel(%arg0: i32, %arg1: memref<1x32x16xf32, #tpu.memory_space<vmem>>, %arg2: memref<1x1x16xf32, #tpu.memory_space<vmem>>, %arg3: memref<3x32x32xf32, #tpu.memory_space<vmem>>, %arg4: memref<32x1xf32, #tpu.memory_space<vmem>>, %arg5: memref<32x1xf32, #tpu.memory_space<vmem>>, %arg6: memref<32x1xf32, #tpu.memory_space<vmem>>, %arg7: memref<3x32x32xf32, #tpu.memory_space<vmem>>, %arg8: memref<32x1xf32, #tpu.memory_space<vmem>>, %arg9: memref<32x1xf32, #tpu.memory_space<vmem>>, %arg10: memref<32x1xf32, #tpu.memory_space<vmem>>, %arg11: memref<32x32xf32, #tpu.memory_space<vmem>>, %arg12: memref<1x32x16xf32, #tpu.memory_space<vmem>>, %arg13: memref<32x18xf32, #tpu.memory_space<vmem>>) attributes {dimension_semantics = [#tpu.dimension_semantics<parallel>], iteration_bounds = array<i64: 2>, scalar_prefetch = 0 : i64, scratch_operands = 1 : i64, tpu.core_type = #tpu.core_type<tc>, window_params = [{transform_indices = @transform_0, window_bounds = array<i64: 1, 32, 16>}, {transform_indices = @transform_1, window_bounds = array<i64: 1, 1, 16>}, {pipeline_mode = #tpu.pipeline_mode<synchronous>, transform_indices = @transform_2, window_bounds = array<i64: 3, 32, 32>}, {pipeline_mode = #tpu.pipeline_mode<synchronous>, transform_indices = @transform_3, window_bounds = array<i64: 32, 1>}, {pipeline_mode = #tpu.pipeline_mode<synchronous>, transform_indices = @transform_4, window_bounds = array<i64: 32, 1>}, {pipeline_mode = #tpu.pipeline_mode<synchronous>, transform_indices = @transform_5, window_bounds = array<i64: 32, 1>}, {pipeline_mode = #tpu.pipeline_mode<synchronous>, transform_indices = @transform_6, window_bounds = array<i64: 3, 32, 32>}, {pipeline_mode = #tpu.pipeline_mode<synchronous>, transform_indices = @transform_7, window_bounds = array<i64: 32, 1>}, {pipeline_mode = #tpu.pipeline_mode<synchronous>, transform_indices = @transform_8, window_bounds = array<i64: 32, 1>}, {pipeline_mode = #tpu.pipeline_mode<synchronous>, transform_indices = @transform_9, window_bounds = array<i64: 32, 1>}, {pipeline_mode = #tpu.pipeline_mode<synchronous>, transform_indices = @transform_10, window_bounds = array<i64: 32, 32>}, {transform_indices = @transform_11, window_bounds = array<i64: 1, 32, 16>}]} {
    %c0 = arith.constant 0 : index
    %c0_0 = arith.constant 0 : index
    %c0_1 = arith.constant 0 : index
    %0 = vector.load %arg1[%c0, %c0_0, %c0_1] : memref<1x32x16xf32, #tpu.memory_space<vmem>>, vector<1x32x16xf32>
    %1 = vector.shape_cast %0 : vector<1x32x16xf32> to vector<32x16xf32>
    %c0_2 = arith.constant 0 : index
    %c0_3 = arith.constant 0 : index
    %c0_4 = arith.constant 0 : index
    %2 = vector.load %arg2[%c0_2, %c0_3, %c0_4] : memref<1x1x16xf32, #tpu.memory_space<vmem>>, vector<1x1x16xf32>
    %3 = vector.shape_cast %2 : vector<1x1x16xf32> to vector<1x16xf32>
    %c0_5 = arith.constant 0 : index
    %c0_6 = arith.constant 0 : index
    %4 = vector.load %arg11[%c0_5, %c0_6] : memref<32x32xf32, #tpu.memory_space<vmem>>, vector<32x32xf32>
    %cst = arith.constant 0.000000e+00 : f32
    %5 = vector.broadcast %cst : f32 to vector<32x1xf32>
    %c0_7 = arith.constant 0 : index
    %c0_8 = arith.constant 0 : index
    %6 = vector.load %arg13[%c0_7, %c0_8] : memref<32x18xf32, #tpu.memory_space<vmem>>, vector<32x1xf32>
    tpu.vector_store %arg13[%c0_7, %c0_8], %5 {strides = array<i32>} : memref<32x18xf32, #tpu.memory_space<vmem>>, vector<32x1xf32>,
    %cst_9 = arith.constant 0.000000e+00 : f32
    %7 = vector.broadcast %cst_9 : f32 to vector<32x1xf32>
    %c0_10 = arith.constant 0 : index
    %c17 = arith.constant 17 : index
    %8 = vector.load %arg13[%c0_10, %c17] : memref<32x18xf32, #tpu.memory_space<vmem>>, vector<32x1xf32>
    tpu.vector_store %arg13[%c0_10, %c17], %7 {strides = array<i32>} : memref<32x18xf32, #tpu.memory_space<vmem>>, vector<32x1xf32>,
    %9 = vector.broadcast %3 : vector<1x16xf32> to vector<32x16xf32>
    %10 = arith.mulf %1, %9 : vector<32x16xf32>
    %c0_11 = arith.constant 0 : index
    %c1 = arith.constant 1 : index
    %11 = vector.load %arg13[%c0_11, %c1] : memref<32x18xf32, #tpu.memory_space<vmem>>, vector<32x16xf32>
    tpu.vector_store %arg13[%c0_11, %c1], %10 {strides = array<i32>} : memref<32x18xf32, #tpu.memory_space<vmem>>, vector<32x16xf32>,
    %c1_12 = arith.constant 1 : index
    %c0_13 = arith.constant 0 : index
    %c0_14 = arith.constant 0 : index
    %12 = vector.load %arg3[%c1_12, %c0_13, %c0_14] : memref<3x32x32xf32, #tpu.memory_space<vmem>>, vector<1x32x32xf32>
    %13 = vector.shape_cast %12 : vector<1x32x32xf32> to vector<32x32xf32>
    %c0_15 = arith.constant 0 : index
    %c1_16 = arith.constant 1 : index
    %14 = vector.load %arg13[%c0_15, %c1_16] : memref<32x18xf32, #tpu.memory_space<vmem>>, vector<32x16xf32>
    %cst_17 = arith.constant dense<0.000000e+00> : vector<32x16xf32>
    %15 = tpu.matmul %13, %14, %cst_17 {dimension_numbers = #tpu.dot_dimension_numbers<[1], [0], [0], [1], [0, 0, 1, 1], [], []>} : vector<32x32xf32>, vector<32x16xf32>, vector<32x16xf32> -> vector<32x16xf32>
    %c0_18 = arith.constant 0 : index
    %c0_19 = arith.constant 0 : index
    %c0_20 = arith.constant 0 : index
    %16 = vector.load %arg3[%c0_18, %c0_19, %c0_20] : memref<3x32x32xf32, #tpu.memory_space<vmem>>, vector<1x32x32xf32>
    %17 = vector.shape_cast %16 : vector<1x32x32xf32> to vector<32x32xf32>
    %c0_21 = arith.constant 0 : index
    %c0_22 = arith.constant 0 : index
    %18 = vector.load %arg13[%c0_21, %c0_22] : memref<32x18xf32, #tpu.memory_space<vmem>>, vector<32x16xf32>
    %cst_23 = arith.constant dense<0.000000e+00> : vector<32x16xf32>
    %19 = tpu.matmul %17, %18, %cst_23 {dimension_numbers = #tpu.dot_dimension_numbers<[1], [0], [0], [1], [0, 0, 1, 1], [], []>} : vector<32x32xf32>, vector<32x16xf32>, vector<32x16xf32> -> vector<32x16xf32>
    %20 = arith.addf %15, %19 : vector<32x16xf32>
    %c2 = arith.constant 2 : index
    %c0_24 = arith.constant 0 : index
    %c0_25 = arith.constant 0 : index
    %21 = vector.load %arg3[%c2, %c0_24, %c0_25] : memref<3x32x32xf32, #tpu.memory_space<vmem>>, vector<1x32x32xf32>
    %22 = vector.shape_cast %21 : vector<1x32x32xf32> to vector<32x32xf32>
    %c0_26 = arith.constant 0 : index
    %c2_27 = arith.constant 2 : index
    %23 = vector.load %arg13[%c0_26, %c2_27] : memref<32x18xf32, #tpu.memory_space<vmem>>, vector<32x16xf32>
    %cst_28 = arith.constant dense<0.000000e+00> : vector<32x16xf32>
    %24 = tpu.matmul %22, %23, %cst_28 {dimension_numbers = #tpu.dot_dimension_numbers<[1], [0], [0], [1], [0, 0, 1, 1], [], []>} : vector<32x32xf32>, vector<32x16xf32>, vector<32x16xf32> -> vector<32x16xf32>
    %25 = arith.addf %20, %24 : vector<32x16xf32>
    %c0_29 = arith.constant 0 : index
    %c0_30 = arith.constant 0 : index
    %26 = vector.load %arg4[%c0_29, %c0_30] : memref<32x1xf32, #tpu.memory_space<vmem>>, vector<32x1xf32>
    %27 = vector.broadcast %26 : vector<32x1xf32> to vector<32x16xf32>
    %28 = arith.addf %25, %27 : vector<32x16xf32>
    %29 = vector.broadcast %3 : vector<1x16xf32> to vector<32x16xf32>
    %30 = arith.mulf %28, %29 : vector<32x16xf32>
    %cst_31 = arith.constant dense<0.000000e+00> : vector<32xf32>
    %31 = vector.multi_reduction <add>, %30, %cst_31 [1] : vector<32x16xf32> to vector<32xf32>
    %32 = vector.shape_cast %31 : vector<32xf32> to vector<32x1xf32>
    %cst_32 = arith.constant dense<0.000000e+00> : vector<32x1xf32>
    %33 = tpu.matmul %4, %32, %cst_32 {dimension_numbers = #tpu.dot_dimension_numbers<[1], [0], [0], [1], [0, 0, 1, 1], [], []>} : vector<32x32xf32>, vector<32x1xf32>, vector<32x1xf32> -> vector<32x1xf32>
    %34 = vector.broadcast %33 : vector<32x1xf32> to vector<32x16xf32>
    %35 = arith.subf %30, %34 : vector<32x16xf32>
    %36 = arith.mulf %35, %35 : vector<32x16xf32>
    %cst_33 = arith.constant dense<0.000000e+00> : vector<32xf32>
    %37 = vector.multi_reduction <add>, %36, %cst_33 [1] : vector<32x16xf32> to vector<32xf32>
    %38 = vector.shape_cast %37 : vector<32xf32> to vector<32x1xf32>
    %cst_34 = arith.constant dense<0.000000e+00> : vector<32x1xf32>
    %39 = tpu.matmul %4, %38, %cst_34 {dimension_numbers = #tpu.dot_dimension_numbers<[1], [0], [0], [1], [0, 0, 1, 1], [], []>} : vector<32x32xf32>, vector<32x1xf32>, vector<32x1xf32> -> vector<32x1xf32>
    %cst_35 = arith.constant 9.99999974E-6 : f32
    %40 = vector.broadcast %cst_35 : f32 to vector<32x1xf32>
    %41 = arith.addf %39, %40 : vector<32x1xf32>
    %42 = math.rsqrt %41 : vector<32x1xf32>
    %43 = vector.broadcast %42 : vector<32x1xf32> to vector<32x16xf32>
    %44 = arith.mulf %35, %43 : vector<32x16xf32>
    %c0_36 = arith.constant 0 : index
    %c0_37 = arith.constant 0 : index
    %45 = vector.load %arg5[%c0_36, %c0_37] : memref<32x1xf32, #tpu.memory_space<vmem>>, vector<32x1xf32>
    %46 = vector.broadcast %45 : vector<32x1xf32> to vector<32x16xf32>
    %47 = arith.mulf %44, %46 : vector<32x16xf32>
    %c0_38 = arith.constant 0 : index
    %c0_39 = arith.constant 0 : index
    %48 = vector.load %arg6[%c0_38, %c0_39] : memref<32x1xf32, #tpu.memory_space<vmem>>, vector<32x1xf32>
    %49 = vector.broadcast %48 : vector<32x1xf32> to vector<32x16xf32>
    %50 = arith.addf %47, %49 : vector<32x16xf32>
    %51 = arith.negf %50 : vector<32x16xf32>
    %52 = math.exp %51 : vector<32x16xf32>
    %cst_40 = arith.constant 1.000000e+00 : f32
    %53 = vector.broadcast %cst_40 : f32 to vector<32x16xf32>
    %54 = arith.addf %53, %52 : vector<32x16xf32>
    %55 = arith.divf %53, %54 : vector<32x16xf32>
    %56 = arith.mulf %50, %55 : vector<32x16xf32>
    %57 = vector.broadcast %3 : vector<1x16xf32> to vector<32x16xf32>
    %58 = arith.mulf %56, %57 : vector<32x16xf32>
    %c0_41 = arith.constant 0 : index
    %c1_42 = arith.constant 1 : index
    %59 = vector.load %arg13[%c0_41, %c1_42] : memref<32x18xf32, #tpu.memory_space<vmem>>, vector<32x16xf32>
    tpu.vector_store %arg13[%c0_41, %c1_42], %58 {strides = array<i32>} : memref<32x18xf32, #tpu.memory_space<vmem>>, vector<32x16xf32>,
    %c1_43 = arith.constant 1 : index
    %c0_44 = arith.constant 0 : index
    %c0_45 = arith.constant 0 : index
    %60 = vector.load %arg7[%c1_43, %c0_44, %c0_45] : memref<3x32x32xf32, #tpu.memory_space<vmem>>, vector<1x32x32xf32>
    %61 = vector.shape_cast %60 : vector<1x32x32xf32> to vector<32x32xf32>
    %c0_46 = arith.constant 0 : index
    %c1_47 = arith.constant 1 : index
    %62 = vector.load %arg13[%c0_46, %c1_47] : memref<32x18xf32, #tpu.memory_space<vmem>>, vector<32x16xf32>
    %cst_48 = arith.constant dense<0.000000e+00> : vector<32x16xf32>
    %63 = tpu.matmul %61, %62, %cst_48 {dimension_numbers = #tpu.dot_dimension_numbers<[1], [0], [0], [1], [0, 0, 1, 1], [], []>} : vector<32x32xf32>, vector<32x16xf32>, vector<32x16xf32> -> vector<32x16xf32>
    %c0_49 = arith.constant 0 : index
    %c0_50 = arith.constant 0 : index
    %c0_51 = arith.constant 0 : index
    %64 = vector.load %arg7[%c0_49, %c0_50, %c0_51] : memref<3x32x32xf32, #tpu.memory_space<vmem>>, vector<1x32x32xf32>
    %65 = vector.shape_cast %64 : vector<1x32x32xf32> to vector<32x32xf32>
    %c0_52 = arith.constant 0 : index
    %c0_53 = arith.constant 0 : index
    %66 = vector.load %arg13[%c0_52, %c0_53] : memref<32x18xf32, #tpu.memory_space<vmem>>, vector<32x16xf32>
    %cst_54 = arith.constant dense<0.000000e+00> : vector<32x16xf32>
    %67 = tpu.matmul %65, %66, %cst_54 {dimension_numbers = #tpu.dot_dimension_numbers<[1], [0], [0], [1], [0, 0, 1, 1], [], []>} : vector<32x32xf32>, vector<32x16xf32>, vector<32x16xf32> -> vector<32x16xf32>
    %68 = arith.addf %63, %67 : vector<32x16xf32>
    %c2_55 = arith.constant 2 : index
    %c0_56 = arith.constant 0 : index
    %c0_57 = arith.constant 0 : index
    %69 = vector.load %arg7[%c2_55, %c0_56, %c0_57] : memref<3x32x32xf32, #tpu.memory_space<vmem>>, vector<1x32x32xf32>
    %70 = vector.shape_cast %69 : vector<1x32x32xf32> to vector<32x32xf32>
    %c0_58 = arith.constant 0 : index
    %c2_59 = arith.constant 2 : index
    %71 = vector.load %arg13[%c0_58, %c2_59] : memref<32x18xf32, #tpu.memory_space<vmem>>, vector<32x16xf32>
    %cst_60 = arith.constant dense<0.000000e+00> : vector<32x16xf32>
    %72 = tpu.matmul %70, %71, %cst_60 {dimension_numbers = #tpu.dot_dimension_numbers<[1], [0], [0], [1], [0, 0, 1, 1], [], []>} : vector<32x32xf32>, vector<32x16xf32>, vector<32x16xf32> -> vector<32x16xf32>
    %73 = arith.addf %68, %72 : vector<32x16xf32>
    %c0_61 = arith.constant 0 : index
    %c0_62 = arith.constant 0 : index
    %74 = vector.load %arg8[%c0_61, %c0_62] : memref<32x1xf32, #tpu.memory_space<vmem>>, vector<32x1xf32>
    %75 = vector.broadcast %74 : vector<32x1xf32> to vector<32x16xf32>
    %76 = arith.addf %73, %75 : vector<32x16xf32>
    %77 = vector.broadcast %3 : vector<1x16xf32> to vector<32x16xf32>
    %78 = arith.mulf %76, %77 : vector<32x16xf32>
    %cst_63 = arith.constant dense<0.000000e+00> : vector<32xf32>
    %79 = vector.multi_reduction <add>, %78, %cst_63 [1] : vector<32x16xf32> to vector<32xf32>
    %80 = vector.shape_cast %79 : vector<32xf32> to vector<32x1xf32>
    %cst_64 = arith.constant dense<0.000000e+00> : vector<32x1xf32>
    %81 = tpu.matmul %4, %80, %cst_64 {dimension_numbers = #tpu.dot_dimension_numbers<[1], [0], [0], [1], [0, 0, 1, 1], [], []>} : vector<32x32xf32>, vector<32x1xf32>, vector<32x1xf32> -> vector<32x1xf32>
    %82 = vector.broadcast %81 : vector<32x1xf32> to vector<32x16xf32>
    %83 = arith.subf %78, %82 : vector<32x16xf32>
    %84 = arith.mulf %83, %83 : vector<32x16xf32>
    %cst_65 = arith.constant dense<0.000000e+00> : vector<32xf32>
    %85 = vector.multi_reduction <add>, %84, %cst_65 [1] : vector<32x16xf32> to vector<32xf32>
    %86 = vector.shape_cast %85 : vector<32xf32> to vector<32x1xf32>
    %cst_66 = arith.constant dense<0.000000e+00> : vector<32x1xf32>
    %87 = tpu.matmul %4, %86, %cst_66 {dimension_numbers = #tpu.dot_dimension_numbers<[1], [0], [0], [1], [0, 0, 1, 1], [], []>} : vector<32x32xf32>, vector<32x1xf32>, vector<32x1xf32> -> vector<32x1xf32>
    %cst_67 = arith.constant 9.99999974E-6 : f32
    %88 = vector.broadcast %cst_67 : f32 to vector<32x1xf32>
    %89 = arith.addf %87, %88 : vector<32x1xf32>
    %90 = math.rsqrt %89 : vector<32x1xf32>
    %91 = vector.broadcast %90 : vector<32x1xf32> to vector<32x16xf32>
    %92 = arith.mulf %83, %91 : vector<32x16xf32>
    %c0_68 = arith.constant 0 : index
    %c0_69 = arith.constant 0 : index
    %93 = vector.load %arg9[%c0_68, %c0_69] : memref<32x1xf32, #tpu.memory_space<vmem>>, vector<32x1xf32>
    %94 = vector.broadcast %93 : vector<32x1xf32> to vector<32x16xf32>
    %95 = arith.mulf %92, %94 : vector<32x16xf32>
    %c0_70 = arith.constant 0 : index
    %c0_71 = arith.constant 0 : index
    %96 = vector.load %arg10[%c0_70, %c0_71] : memref<32x1xf32, #tpu.memory_space<vmem>>, vector<32x1xf32>
    %97 = vector.broadcast %96 : vector<32x1xf32> to vector<32x16xf32>
    %98 = arith.addf %95, %97 : vector<32x16xf32>
    %99 = arith.negf %98 : vector<32x16xf32>
    %100 = math.exp %99 : vector<32x16xf32>
    %cst_72 = arith.constant 1.000000e+00 : f32
    %101 = vector.broadcast %cst_72 : f32 to vector<32x16xf32>
    %102 = arith.addf %101, %100 : vector<32x16xf32>
    %103 = arith.divf %101, %102 : vector<32x16xf32>
    %104 = arith.mulf %98, %103 : vector<32x16xf32>
    %105 = arith.addf %104, %1 : vector<32x16xf32>
    %c0_73 = arith.constant 0 : index
    %c0_74 = arith.constant 0 : index
    %c0_75 = arith.constant 0 : index
    %106 = vector.load %arg12[%c0_73, %c0_74, %c0_75] : memref<1x32x16xf32, #tpu.memory_space<vmem>>, vector<1x32x16xf32>
    %107 = vector.shape_cast %106 : vector<1x32x16xf32> to vector<32x16xf32>
    %108 = vector.shape_cast %105 : vector<32x16xf32> to vector<1x32x16xf32>
    tpu.vector_store %arg12[%c0_73, %c0_74, %c0_75], %108 {strides = array<i32>} : memref<1x32x16xf32, #tpu.memory_space<vmem>>, vector<1x32x16xf32>,
    return
  }
  func.func @transform_0(%arg0: i32) -> (i32, i32, i32) {
    %c0_i32 = arith.constant 0 : i32
    %c0_i32_0 = arith.constant 0 : i32
    %c0_i32_1 = arith.constant 0 : i32
    return %arg0, %c0_i32, %c0_i32_0 : i32, i32, i32
  }
  func.func @transform_1(%arg0: i32) -> (i32, i32, i32) {
    %c0_i32 = arith.constant 0 : i32
    %c0_i32_0 = arith.constant 0 : i32
    %c0_i32_1 = arith.constant 0 : i32
    return %arg0, %c0_i32, %c0_i32_0 : i32, i32, i32
  }
  func.func @transform_2(%arg0: i32) -> (i32, i32, i32) {
    %c0_i32 = arith.constant 0 : i32
    %c0_i32_0 = arith.constant 0 : i32
    %c0_i32_1 = arith.constant 0 : i32
    %c0_i32_2 = arith.constant 0 : i32
    return %c0_i32, %c0_i32_0, %c0_i32_1 : i32, i32, i32
  }
  func.func @transform_3(%arg0: i32) -> (i32, i32) {
    %c0_i32 = arith.constant 0 : i32
    %c0_i32_0 = arith.constant 0 : i32
    %c0_i32_1 = arith.constant 0 : i32
    return %c0_i32, %c0_i32_0 : i32, i32
  }
  func.func @transform_4(%arg0: i32) -> (i32, i32) {
    %c0_i32 = arith.constant 0 : i32
    %c0_i32_0 = arith.constant 0 : i32
    %c0_i32_1 = arith.constant 0 : i32
    return %c0_i32, %c0_i32_0 : i32, i32
  }
  func.func @transform_5(%arg0: i32) -> (i32, i32) {
    %c0_i32 = arith.constant 0 : i32
    %c0_i32_0 = arith.constant 0 : i32
    %c0_i32_1 = arith.constant 0 : i32
    return %c0_i32, %c0_i32_0 : i32, i32
  }
  func.func @transform_6(%arg0: i32) -> (i32, i32, i32) {
    %c0_i32 = arith.constant 0 : i32
    %c0_i32_0 = arith.constant 0 : i32
    %c0_i32_1 = arith.constant 0 : i32
    %c0_i32_2 = arith.constant 0 : i32
    return %c0_i32, %c0_i32_0, %c0_i32_1 : i32, i32, i32
  }
  func.func @transform_7(%arg0: i32) -> (i32, i32) {
    %c0_i32 = arith.constant 0 : i32
    %c0_i32_0 = arith.constant 0 : i32
    %c0_i32_1 = arith.constant 0 : i32
    return %c0_i32, %c0_i32_0 : i32, i32
  }
  func.func @transform_8(%arg0: i32) -> (i32, i32) {
    %c0_i32 = arith.constant 0 : i32
    %c0_i32_0 = arith.constant 0 : i32
    %c0_i32_1 = arith.constant 0 : i32
    return %c0_i32, %c0_i32_0 : i32, i32
  }
  func.func @transform_9(%arg0: i32) -> (i32, i32) {
    %c0_i32 = arith.constant 0 : i32
    %c0_i32_0 = arith.constant 0 : i32
    %c0_i32_1 = arith.constant 0 : i32
    return %c0_i32, %c0_i32_0 : i32, i32
  }
  func.func @transform_10(%arg0: i32) -> (i32, i32) {
    %c0_i32 = arith.constant 0 : i32
    %c0_i32_0 = arith.constant 0 : i32
    %c0_i32_1 = arith.constant 0 : i32
    return %c0_i32, %c0_i32_0 : i32, i32
  }
  func.func @transform_11(%arg0: i32) -> (i32, i32, i32) {
    %c0_i32 = arith.constant 0 : i32
    %c0_i32_0 = arith.constant 0 : i32
    %c0_i32_1 = arith.constant 0 : i32
    return %arg0, %c0_i32, %c0_i32_0 : i32, i32, i32
  }
}

</mosaic_0001>

<llo_original>
// kernel: resnet_block.1
$region0: #{resnet_block.1}
  #allocation0 [shape = 'u32[]', space=smem, size = 0x4, offset = 0x4, fixed_abs, tag = 'smem constant byte address 0x4 - core index']
  #allocation1 [shape = 'u32[144,128]{1,0:T(1,128)}', space=vmem, size = 0x12000, scoped, tag = 'internal scratch']
  #allocation2 [shape = 'f32[32,18]{1,0:T(8,128)}', space=vmem, size = 0x4000, scoped, tag = 'scratch operand']
  %s0 = inlined_call_operand.vmem [shape: f32[2,32,16], index: 0, kind: input, shape index: {}]
  %s1 = inlined_call_operand.vmem [shape: f32[2,1,16], index: 1, kind: input, shape index: {}]
  %s2 = inlined_call_operand.vmem [shape: f32[3,32,32], index: 2, kind: input, shape index: {}]
  %s3 = inlined_call_operand.vmem [shape: f32[32,1], index: 3, kind: input, shape index: {}]
  %s4 = inlined_call_operand.vmem [shape: f32[32,1], index: 4, kind: input, shape index: {}]
  %s5 = inlined_call_operand.vmem [shape: f32[32,1], index: 5, kind: input, shape index: {}]
  %s6 = inlined_call_operand.vmem [shape: f32[3,32,32], index: 6, kind: input, shape index: {}]
  %s7 = inlined_call_operand.vmem [shape: f32[32,1], index: 7, kind: input, shape index: {}]
  %s8 = inlined_call_operand.vmem [shape: f32[32,1], index: 8, kind: input, shape index: {}]
  %s9 = inlined_call_operand.vmem [shape: f32[32,1], index: 9, kind: input, shape index: {}]
  %s10 = inlined_call_operand.vmem [shape: f32[32,32], index: 10, kind: input, shape index: {}]
  %s11 = inlined_call_operand.vmem [shape: f32[2,32,16], index: 11, kind: output, shape index: {}]
  %s12 = sld [smem:[#allocation0]]
  $region77: #{resnet_block.1} parent=0
    _
  %s14 = ssub.s32 1, %s12
  %s15 = scalar_select 0, %s14, %s12
  loop: start=0, step=1, limit=4
  $region2: #{resnet_block.1} parent=0 // loop_pre_header
    _
  $region3: #{resnet_block.1} parent=0 // loop_header
    %s17 = sphi 0, %s21
    %p18 = scmp.ge.s32.totalorder %s17, 4
    %s27 = sphi 0, %s29
    %s30 = sphi 0, %s27
    %s31 = sphi 0, %s30
    %s47 = sphi 0, %s31
    %s53 = sphi 0, %s55
    %s56 = sphi 0, %s53
    %s57 = sphi 0, %s56
    %s73 = sphi 0, %s57
    %s77 = sphi 0, %s77
    %s79 = sphi 0, %s77
    %s80 = sphi 0, %s79
    %s94 = sphi 0, %s80
    %s98 = sphi 0, %s98
    %s100 = sphi 0, %s98
    %s101 = sphi 0, %s100
    %s115 = sphi 0, %s101
    %s119 = sphi 0, %s119
    %s121 = sphi 0, %s119
    %s122 = sphi 0, %s121
    %s136 = sphi 0, %s122
    %s140 = sphi 0, %s140
    %s142 = sphi 0, %s140
    %s143 = sphi 0, %s142
    %s157 = sphi 0, %s143
    %s161 = sphi 0, %s161
    %s163 = sphi 0, %s161
    %s164 = sphi 0, %s163
    %s178 = sphi 0, %s164
    %s182 = sphi 0, %s182
    %s184 = sphi 0, %s182
    %s185 = sphi 0, %s184
    %s199 = sphi 0, %s185
    %s203 = sphi 0, %s203
    %s205 = sphi 0, %s203
    %s206 = sphi 0, %s205
    %s220 = sphi 0, %s206
    %s224 = sphi 0, %s224
    %s226 = sphi 0, %s224
    %s227 = sphi 0, %s226
    %s241 = sphi 0, %s227
    %s245 = sphi 0, %s245
    %s247 = sphi 0, %s245
    %s248 = sphi 0, %s247
    %s262 = sphi 0, %s248
    %s268 = sphi 0, %s270
    %s271 = sphi 0, %s268
    %s272 = sphi 0, %s271
    %s288 = sphi 0, %s272
  $region4: #{resnet_block.1} parent=0 // loop_header_branch
    %20 = sbr.rel (%p18) target = $region8
  $region5: #{resnet_block.1} parent=0 // loop_body
    %s22 = ssub.s32 %s17, 1
    %s23 = ssub.s32 %s17, 2
    %s24 = sadd.s32 %s17, 1
    %s25 = ssub.s32 %s17, %s24
    %p26 = scmp.eq.s32.totalorder %s25, 0
    %s28 = sadd.s32 %s27, 1
    %s29 = scalar_select %p26, %s27, %s28
    %p32 = pneg %p26
    %p33 = scmp.eq.s32.totalorder %s17, 1
    %p34 = por %p32, %p33
    %p35 = scmp.ne.s32.totalorder %s27, %s30
    %p36 = scmp.eq.s32.totalorder %s17, 0
    %p37 = por %p35, %p36
    %p38 = scmp.ne.s32.totalorder %s27, %s30
    %p39 = scmp.eq.s32.totalorder %s22, 1
    %p40 = por %p38, %p39
    %p41 = scmp.ne.s32.totalorder %s30, %s31
    %p42 = scmp.eq.s32.totalorder %s22, 0
    %p43 = por %p41, %p42
    %p44 = scmp.ne.s32.totalorder %s30, %s31
    %p45 = scmp.eq.s32.totalorder %s23, 1
    %p46 = por %p44, %p45
    %p48 = scmp.ne.s32.totalorder %s31, %s47
    %p49 = scmp.eq.s32.totalorder %s23, 0
    %p50 = por %p48, %p49
    %s51 = ssub.s32 %s17, %s24
    %p52 = scmp.eq.s32.totalorder %s51, 0
    %s54 = sadd.s32 %s53, 1
    %s55 = scalar_select %p52, %s53, %s54
    %p58 = pneg %p52
    %p59 = scmp.eq.s32.totalorder %s17, 1
    %p60 = por %p58, %p59
    %p61 = scmp.ne.s32.totalorder %s53, %s56
    %p62 = scmp.eq.s32.totalorder %s17, 0
    %p63 = por %p61, %p62
    %p64 = scmp.ne.s32.totalorder %s53, %s56
    %p65 = scmp.eq.s32.totalorder %s22, 1
    %p66 = por %p64, %p65
    %p67 = scmp.ne.s32.totalorder %s56, %s57
    %p68 = scmp.eq.s32.totalorder %s22, 0
    %p69 = por %p67, %p68
    %p70 = scmp.ne.s32.totalorder %s56, %s57
    %p71 = scmp.eq.s32.totalorder %s23, 1
    %p72 = por %p70, %p71
    %p74 = scmp.ne.s32.totalorder %s57, %s73
    %p75 = scmp.eq.s32.totalorder %s23, 0
    %p76 = por %p74, %p75
    %s78 = sadd.s32 %s77, 1
    %p81 = scmp.eq.s32.totalorder %s17, 1
    %p82 = scmp.ne.s32.totalorder %s77, %s79
    %p83 = scmp.eq.s32.totalorder %s17, 0
    %p84 = por %p82, %p83
    %p85 = scmp.ne.s32.totalorder %s77, %s79
    %p86 = scmp.eq.s32.totalorder %s22, 1
    %p87 = por %p85, %p86
    %p88 = scmp.ne.s32.totalorder %s79, %s80
    %p89 = scmp.eq.s32.totalorder %s22, 0
    %p90 = por %p88, %p89
    %p91 = scmp.ne.s32.totalorder %s79, %s80
    %p92 = scmp.eq.s32.totalorder %s23, 1
    %p93 = por %p91, %p92
    %p95 = scmp.ne.s32.totalorder %s80, %s94
    %p96 = scmp.eq.s32.totalorder %s23, 0
    %p97 = por %p95, %p96
    %s99 = sadd.s32 %s98, 1
    %p102 = scmp.eq.s32.totalorder %s17, 1
    %p103 = scmp.ne.s32.totalorder %s98, %s100
    %p104 = scmp.eq.s32.totalorder %s17, 0
    %p105 = por %p103, %p104
    %p106 = scmp.ne.s32.totalorder %s98, %s100
    %p107 = scmp.eq.s32.totalorder %s22, 1
    %p108 = por %p106, %p107
    %p109 = scmp.ne.s32.totalorder %s100, %s101
    %p110 = scmp.eq.s32.totalorder %s22, 0
    %p111 = por %p109, %p110
    %p112 = scmp.ne.s32.totalorder %s100, %s101
    %p113 = scmp.eq.s32.totalorder %s23, 1
    %p114 = por %p112, %p113
    %p116 = scmp.ne.s32.totalorder %s101, %s115
    %p117 = scmp.eq.s32.totalorder %s23, 0
    %p118 = por %p116, %p117
    %s120 = sadd.s32 %s119, 1
    %p123 = scmp.eq.s32.totalorder %s17, 1
    %p124 = scmp.ne.s32.totalorder %s119, %s121
    %p125 = scmp.eq.s32.totalorder %s17, 0
    %p126 = por %p124, %p125
    %p127 = scmp.ne.s32.totalorder %s119, %s121
    %p128 = scmp.eq.s32.totalorder %s22, 1
    %p129 = por %p127, %p128
    %p130 = scmp.ne.s32.totalorder %s121, %s122
    %p131 = scmp.eq.s32.totalorder %s22, 0
    %p132 = por %p130, %p131
    %p133 = scmp.ne.s32.totalorder %s121, %s122
    %p134 = scmp.eq.s32.totalorder %s23, 1
    %p135 = por %p133, %p134
    %p137 = scmp.ne.s32.totalorder %s122, %s136
    %p138 = scmp.eq.s32.totalorder %s23, 0
    %p139 = por %p137, %p138
    %s141 = sadd.s32 %s140, 1
    %p144 = scmp.eq.s32.totalorder %s17, 1
    %p145 = scmp.ne.s32.totalorder %s140, %s142
    %p146 = scmp.eq.s32.totalorder %s17, 0
    %p147 = por %p145, %p146
    %p148 = scmp.ne.s32.totalorder %s140, %s142
    %p149 = scmp.eq.s32.totalorder %s22, 1
    %p150 = por %p148, %p149
    %p151 = scmp.ne.s32.totalorder %s142, %s143
    %p152 = scmp.eq.s32.totalorder %s22, 0
    %p153 = por %p151, %p152
    %p154 = scmp.ne.s32.totalorder %s142, %s143
    %p155 = scmp.eq.s32.totalorder %s23, 1
    %p156 = por %p154, %p155
    %p158 = scmp.ne.s32.totalorder %s143, %s157
    %p159 = scmp.eq.s32.totalorder %s23, 0
    %p160 = por %p158, %p159
    %s162 = sadd.s32 %s161, 1
    %p165 = scmp.eq.s32.totalorder %s17, 1
    %p166 = scmp.ne.s32.totalorder %s161, %s163
    %p167 = scmp.eq.s32.totalorder %s17, 0
    %p168 = por %p166, %p167
    %p169 = scmp.ne.s32.totalorder %s161, %s163
    %p170 = scmp.eq.s32.totalorder %s22, 1
    %p171 = por %p169, %p170
    %p172 = scmp.ne.s32.totalorder %s163, %s164
    %p173 = scmp.eq.s32.totalorder %s22, 0
    %p174 = por %p172, %p173
    %p175 = scmp.ne.s32.totalorder %s163, %s164
    %p176 = scmp.eq.s32.totalorder %s23, 1
    %p177 = por %p175, %p176
    %p179 = scmp.ne.s32.totalorder %s164, %s178
    %p180 = scmp.eq.s32.totalorder %s23, 0
    %p181 = por %p179, %p180
    %s183 = sadd.s32 %s182, 1
    %p186 = scmp.eq.s32.totalorder %s17, 1
    %p187 = scmp.ne.s32.totalorder %s182, %s184
    %p188 = scmp.eq.s32.totalorder %s17, 0
    %p189 = por %p187, %p188
    %p190 = scmp.ne.s32.totalorder %s182, %s184
    %p191 = scmp.eq.s32.totalorder %s22, 1
    %p192 = por %p190, %p191
    %p193 = scmp.ne.s32.totalorder %s184, %s185
    %p194 = scmp.eq.s32.totalorder %s22, 0
    %p195 = por %p193, %p194
    %p196 = scmp.ne.s32.totalorder %s184, %s185
    %p197 = scmp.eq.s32.totalorder %s23, 1
    %p198 = por %p196, %p197
    %p200 = scmp.ne.s32.totalorder %s185, %s199
    %p201 = scmp.eq.s32.totalorder %s23, 0
    %p202 = por %p200, %p201
    %s204 = sadd.s32 %s203, 1
    %p207 = scmp.eq.s32.totalorder %s17, 1
    %p208 = scmp.ne.s32.totalorder %s203, %s205
    %p209 = scmp.eq.s32.totalorder %s17, 0
    %p210 = por %p208, %p209
    %p211 = scmp.ne.s32.totalorder %s203, %s205
    %p212 = scmp.eq.s32.totalorder %s22, 1
    %p213 = por %p211, %p212
    %p214 = scmp.ne.s32.totalorder %s205, %s206
    %p215 = scmp.eq.s32.totalorder %s22, 0
    %p216 = por %p214, %p215
    %p217 = scmp.ne.s32.totalorder %s205, %s206
    %p218 = scmp.eq.s32.totalorder %s23, 1
    %p219 = por %p217, %p218
    %p221 = scmp.ne.s32.totalorder %s206, %s220
    %p222 = scmp.eq.s32.totalorder %s23, 0
    %p223 = por %p221, %p222
    %s225 = sadd.s32 %s224, 1
    %p228 = scmp.eq.s32.totalorder %s17, 1
    %p229 = scmp.ne.s32.totalorder %s224, %s226
    %p230 = scmp.eq.s32.totalorder %s17, 0
    %p231 = por %p229, %p230
    %p232 = scmp.ne.s32.totalorder %s224, %s226
    %p233 = scmp.eq.s32.totalorder %s22, 1
    %p234 = por %p232, %p233
    %p235 = scmp.ne.s32.totalorder %s226, %s227
    %p236 = scmp.eq.s32.totalorder %s22, 0
    %p237 = por %p235, %p236
    %p238 = scmp.ne.s32.totalorder %s226, %s227
    %p239 = scmp.eq.s32.totalorder %s23, 1
    %p240 = por %p238, %p239
    %p242 = scmp.ne.s32.totalorder %s227, %s241
    %p243 = scmp.eq.s32.totalorder %s23, 0
    %p244 = por %p242, %p243
    %s246 = sadd.s32 %s245, 1
    %p249 = scmp.eq.s32.totalorder %s17, 1
    %p250 = scmp.ne.s32.totalorder %s245, %s247
    %p251 = scmp.eq.s32.totalorder %s17, 0
    %p252 = por %p250, %p251
    %p253 = scmp.ne.s32.totalorder %s245, %s247
    %p254 = scmp.eq.s32.totalorder %s22, 1
    %p255 = por %p253, %p254
    %p256 = scmp.ne.s32.totalorder %s247, %s248
    %p257 = scmp.eq.s32.totalorder %s22, 0
    %p258 = por %p256, %p257
    %p259 = scmp.ne.s32.totalorder %s247, %s248
    %p260 = scmp.eq.s32.totalorder %s23, 1
    %p261 = por %p259, %p260
    %p263 = scmp.ne.s32.totalorder %s248, %s262
    %p264 = scmp.eq.s32.totalorder %s23, 0
    %p265 = por %p263, %p264
    %s266 = ssub.s32 %s17, %s24
    %p267 = scmp.eq.s32.totalorder %s266, 0
    %s269 = sadd.s32 %s268, 1
    %s270 = scalar_select %p267, %s268, %s269
    %p273 = pneg %p267
    %p274 = scmp.eq.s32.totalorder %s17, 1
    %p275 = por %p273, %p274
    %p276 = scmp.ne.s32.totalorder %s268, %s271
    %p277 = scmp.eq.s32.totalorder %s17, 0
    %p278 = por %p276, %p277
    %p279 = scmp.ne.s32.totalorder %s268, %s271
    %p280 = scmp.eq.s32.totalorder %s22, 1
    %p281 = por %p279, %p280
    %p282 = scmp.ne.s32.totalorder %s271, %s272
    %p283 = scmp.eq.s32.totalorder %s22, 0
    %p284 = por %p282, %p283
    %p285 = scmp.ne.s32.totalorder %s271, %s272
    %p286 = scmp.eq.s32.totalorder %s23, 1
    %p287 = por %p285, %p286
    %p289 = scmp.ne.s32.totalorder %s272, %s288
    %p290 = scmp.eq.s32.totalorder %s23, 0
    %p291 = por %p289, %p290
    %p292 = scmp.le.s32.totalorder 1, %s17
    %p293 = scmp.lt.s32.totalorder %s17, 3
    %p294 = pnand %p292, %p293
    %p295 = pneg %p294
    // Predicated region
    $region9: #{resnet_block.1} parent=5 // pred_check
      _
    $region10: #{resnet_block.1} parent=5 // pred_check_branch
      %297 = sbr.rel (%p294) target = $region12
    $region11: #{resnet_block.1} parent=5 // pred_region
      %s298 = ssub.s32 %s17, 1
      // Predicated region
      $region13: #{resnet_block.1} parent=11 // pred_check
        %p299 = pneg %p90
      $region14: #{resnet_block.1} parent=11 // pred_check_branch
        %301 = sbr.rel (%p299) target = $region16
      $region15: #{resnet_block.1} parent=11 // pred_region
        _
      $region16: #{resnet_block.1} parent=11 // pred_fallthru
        _
      // Predicated region
      $region17: #{resnet_block.1} parent=11 // pred_check
        %p302 = pneg %p111
      $region18: #{resnet_block.1} parent=11 // pred_check_branch
        %304 = sbr.rel (%p302) target = $region20
      $region19: #{resnet_block.1} parent=11 // pred_region
        _
      $region20: #{resnet_block.1} parent=11 // pred_fallthru
        _
      // Predicated region
      $region21: #{resnet_block.1} parent=11 // pred_check
        %p305 = pneg %p132
      $region22: #{resnet_block.1} parent=11 // pred_check_branch
        %307 = sbr.rel (%p305) target = $region24
      $region23: #{resnet_block.1} parent=11 // pred_region
        _
      $region24: #{resnet_block.1} parent=11 // pred_fallthru
        _
      // Predicated region
      $region25: #{resnet_block.1} parent=11 // pred_check
        %p308 = pneg %p153
      $region26: #{resnet_block.1} parent=11 // pred_check_branch
        %310 = sbr.rel (%p308) target = $region28
      $region27: #{resnet_block.1} parent=11 // pred_region
        _
      $region28: #{resnet_block.1} parent=11 // pred_fallthru
        _
      // Predicated region
      $region29: #{resnet_block.1} parent=11 // pred_check
        %p311 = pneg %p174
      $region30: #{resnet_block.1} parent=11 // pred_check_branch
        %313 = sbr.rel (%p311) target = $region32
      $region31: #{resnet_block.1} parent=11 // pred_region
        _
      $region32: #{resnet_block.1} parent=11 // pred_fallthru
        _
      // Predicated region
      $region33: #{resnet_block.1} parent=11 // pred_check
        %p314 = pneg %p195
      $region34: #{resnet_block.1} parent=11 // pred_check_branch
        %316 = sbr.rel (%p314) target = $region36
      $region35: #{resnet_block.1} parent=11 // pred_region
        _
      $region36: #{resnet_block.1} parent=11 // pred_fallthru
        _
      // Predicated region
      $region37: #{resnet_block.1} parent=11 // pred_check
        %p317 = pneg %p216
      $region38: #{resnet_block.1} parent=11 // pred_check_branch
        %319 = sbr.rel (%p317) target = $region40
      $region39: #{resnet_block.1} parent=11 // pred_region
        _
      $region40: #{resnet_block.1} parent=11 // pred_fallthru
        _
      // Predicated region
      $region41: #{resnet_block.1} parent=11 // pred_check
        %p320 = pneg %p237
      $region42: #{resnet_block.1} parent=11 // pred_check_branch
        %322 = sbr.rel (%p320) target = $region44
      $region43: #{resnet_block.1} parent=11 // pred_region
        _
      $region44: #{resnet_block.1} parent=11 // pred_fallthru
        _
      // Predicated region
      $region45: #{resnet_block.1} parent=11 // pred_check
        %p323 = pneg %p258
      $region46: #{resnet_block.1} parent=11 // pred_check_branch
        %325 = sbr.rel (%p323) target = $region48
      $region47: #{resnet_block.1} parent=11 // pred_region
        _
      $region48: #{resnet_block.1} parent=11 // pred_fallthru
        _
    $region12: #{resnet_block.1} parent=5 // pred_fallthru
      _
    %p326 = scmp.lt.s32.totalorder %s17, 2
    // Predicated region
    $region49: #{resnet_block.1} parent=5 // pred_check
      %p327 = pneg %p326
    $region50: #{resnet_block.1} parent=5 // pred_check_branch
      %329 = sbr.rel (%p327) target = $region52
    $region51: #{resnet_block.1} parent=5 // pred_region
      // Predicated region
      $region53: #{resnet_block.1} parent=51 // pred_check
        %p330 = pneg %p37
      $region54: #{resnet_block.1} parent=51 // pred_check_branch
        %332 = sbr.rel (%p330) target = $region56
      $region55: #{resnet_block.1} parent=51 // pred_region
        %p333 = scmp.lt.s32.totalorder %s17, 1
        %s334 = scalar_select %p333, %s17, 1
        %s335 = smul.addr %s334, 4
        %s336 = smul.addr %s335, 8
        %s337 = scalar_lea.vmem %s0, %s336
      $region56: #{resnet_block.1} parent=51 // pred_fallthru
        _
      // Predicated region
      $region57: #{resnet_block.1} parent=51 // pred_check
        %p338 = pneg %p63
      $region58: #{resnet_block.1} parent=51 // pred_check_branch
        %340 = sbr.rel (%p338) target = $region60
      $region59: #{resnet_block.1} parent=51 // pred_region
        %p341 = scmp.lt.s32.totalorder %s17, 1
        %s342 = scalar_select %p341, %s17, 1
        %s343 = scalar_lea.vmem %s1, %s342
      $region60: #{resnet_block.1} parent=51 // pred_fallthru
        _
    $region52: #{resnet_block.1} parent=5 // pred_fallthru
      _
    %p344 = scmp.le.s32.totalorder 1, %s17
    %p345 = scmp.lt.s32.totalorder %s17, 3
    %p346 = pnand %p344, %p345
    %p347 = pneg %p346
    // Predicated region
    $region61: #{resnet_block.1} parent=5 // pred_check
      _
    $region62: #{resnet_block.1} parent=5 // pred_check_branch
      %349 = sbr.rel (%p346) target = $region64
    $region63: #{resnet_block.1} parent=5 // pred_region
      %s350 = ssub.s32 %s17, 1
      %p351 = scmp.lt.s32.totalorder %s22, 1
      %s352 = scalar_select %p351, %s22, 1
      %s353 = smul.addr %s352, 4
      %s354 = smul.addr %s353, 8
      %s355 = scalar_lea.vmem %s0, %s354
      %p356 = pneg %p43
      %p357 = pneg %p40
      %p358 = scmp.lt.s32.totalorder %s22, 1
      %s359 = scalar_select %p358, %s22, 1
      %s360 = scalar_lea.vmem %s1, %s359
      %p361 = pneg %p69
      %p362 = pneg %p66
      %p363 = pneg %p90
      %p364 = pneg %p87
      %p365 = pneg %p111
      %p366 = pneg %p108
      %p367 = pneg %p132
      %p368 = pneg %p129
      %p369 = pneg %p153
      %p370 = pneg %p150
      %p371 = pneg %p174
      %p372 = pneg %p171
      %p373 = pneg %p195
      %p374 = pneg %p192
      %p375 = pneg %p216
      %p376 = pneg %p213
      %p377 = pneg %p237
      %p378 = pneg %p234
      %p379 = pneg %p258
      %p380 = pneg %p255
      %p381 = pneg %p284
      %p382 = pneg %p281
      %p383 = scmp.lt.s32.totalorder %s22, 1
      %s384 = scalar_select %p383, %s22, 1
      %s385 = smul.addr %s384, 4
      %s386 = smul.addr %s385, 8
      %s387 = scalar_lea.vmem %s11, %s386
      %p388 = scmp.lt.s32.totalorder %s22, 1
      %s389 = scalar_select %p388, %s22, 1
      %s390 = smul.addr %s389, 4
      %s391 = smul.addr %s390, 8
      %s392 = scalar_lea.vmem %s0, %s391
      %p393 = scmp.lt.s32.totalorder %s22, 1
      %s394 = scalar_select %p393, %s22, 1
      %s395 = scalar_lea.vmem %s1, %s394
      %p396 = scmp.lt.s32.totalorder %s22, 1
      %s397 = scalar_select %p396, %s22, 1
      %s398 = smul.addr %s397, 4
      %s399 = smul.addr %s398, 8
      %s400 = scalar_lea.vmem %s11, %s399
      %v401 = vld [vmem:[%s392] sm:$0xff]
      %v402 = vld [vmem:[%s392 + $0x8] sm:$0xff]
      %v403 = vld [vmem:[%s392 + $0x10] sm:$0xff]
      %v404 = vld [vmem:[%s392 + $0x18] sm:$0xff]
      %v405 = vld [vmem:[%s395] sm:$0x1]
      %v406 = vld [vmem:[%s10] sm:$0xff]
      %v407 = vld [vmem:[%s10 + $0x8] sm:$0xff]
      %v408 = vld [vmem:[%s10 + $0x10] sm:$0xff]
      %v409 = vld [vmem:[%s10 + $0x18] sm:$0xff]
      %vm410 = vcmask 7168
      %411 = vst.msk [vmem:[#allocation2] sm:$0xff] %vm410, 0.0
      %412 = vst.msk [vmem:[#allocation2 + $0x8] sm:$0xff] %vm410, 0.0
      %413 = vst.msk [vmem:[#allocation2 + $0x10] sm:$0xff] %vm410, 0.0
      %414 = vst.msk [vmem:[#allocation2 + $0x18] sm:$0xff] %vm410, 0.0
      %vm415 = vcmask 146568
      %416 = vst.msk [vmem:[#allocation2] sm:$0xff] %vm415, 0.0
      %417 = vst.msk [vmem:[#allocation2 + $0x8] sm:$0xff] %vm415, 0.0
      %418 = vst.msk [vmem:[#allocation2 + $0x10] sm:$0xff] %vm415, 0.0
      %419 = vst.msk [vmem:[#allocation2 + $0x18] sm:$0xff] %vm415, 0.0
      %v421 = vlaneseq
      %v422 = vshrl.u32 %v421, 7
      %v423 = vsub.s32 0, %v422
      %v424 = vrot.slane %v405, %v423
      %v426 = vmul.f32 %v401, %v424
      %v427 = vmul.f32 %v402, %v424
      %v428 = vmul.f32 %v403, %v424
      %v429 = vmul.f32 %v404, %v424
      %434 = vrot.lane.b32.xlu0 %v426, 1
      %v435 = vpop.permute.xlu0 %434
      %436 = vrot.lane.b32.xlu0 %v427, 1
      %v437 = vpop.permute.xlu0 %436
      %438 = vrot.lane.b32.xlu0 %v428, 1
      %v439 = vpop.permute.xlu0 %438
      %440 = vrot.lane.b32.xlu0 %v429, 1
      %v441 = vpop.permute.xlu0 %440
      %vm446 = vcmask 138248
      %447 = vst.msk [vmem:[#allocation2] sm:$0xff] %vm446, %v435
      %448 = vst.msk [vmem:[#allocation2 + $0x8] sm:$0xff] %vm446, %v437
      %449 = vst.msk [vmem:[#allocation2 + $0x10] sm:$0xff] %vm446, %v439
      %450 = vst.msk [vmem:[#allocation2 + $0x18] sm:$0xff] %vm446, %v441
      %s451 = scalar_lea.vmem %s2, 32
      %v452 = vld [vmem:[%s451] sm:$0xff]
      %v453 = vld [vmem:[%s451 + $0x8] sm:$0xff]
      %v454 = vld [vmem:[%s451 + $0x10] sm:$0xff]
      %v455 = vld [vmem:[%s451 + $0x18] sm:$0xff]
      %v456 = vld [vmem:[#allocation2] sm:$0xff]
      %v457 = vld [vmem:[#allocation2 + $0x8] sm:$0xff]
      %v458 = vld [vmem:[#allocation2 + $0x10] sm:$0xff]
      %v459 = vld [vmem:[#allocation2 + $0x18] sm:$0xff]
      %v460 = vld [vmem:[%s2] sm:$0xff]
      %v461 = vld [vmem:[%s2 + $0x8] sm:$0xff]
      %v462 = vld [vmem:[%s2 + $0x10] sm:$0xff]
      %v463 = vld [vmem:[%s2 + $0x18] sm:$0xff]
      %vm464 = vcmask 261120
      %v466 = vsel %vm464, %v460, 0
      %v469 = vsel %vm464, %v461, 0
      %v472 = vsel %vm464, %v462, 0
      %v475 = vsel %vm464, %v463, 0
      %477 = vmatprep.subr.mxu0 0.0
      %478 = vmatpush1.msra.mxu0 %v456
      %479 = vmatprep.subr.mxu0 0.0
      %480 = vmatpush1.msra.mxu0 %v457
      %481 = vmatprep.subr.mxu0 0.0
      %482 = vmatpush1.msra.mxu0 %v458
      %483 = vmatprep.subr.mxu0 0.0
      %484 = vmatpush1.msra.mxu0 %v459
      %485 = vmatprep.subr.mxu0 0.0
      %486 = vmatpush1.msra.mxu0 0.0
      %487 = vmatprep.subr.mxu0 0.0
      %488 = vmatpush1.msra.mxu0 0.0
      %489 = vmatprep.subr.mxu0 0.0
      %490 = vmatpush1.msra.mxu0 0.0
      %491 = vmatprep.subr.mxu0 0.0
      %492 = vmatpush1.msra.mxu0 0.0
      %493 = vmatprep.subr.mxu0 0.0
      %494 = vmatpush1.msra.mxu0 0.0
      %495 = vmatprep.subr.mxu0 0.0
      %496 = vmatpush1.msra.mxu0 0.0
      %497 = vmatprep.subr.mxu0 0.0
      %498 = vmatpush1.msra.mxu0 0.0
      %499 = vmatprep.subr.mxu0 0.0
      %500 = vmatpush1.msra.mxu0 0.0
      %501 = vmatprep.subr.mxu0 0.0
      %502 = vmatpush1.msra.mxu0 0.0
      %503 = vmatprep.subr.mxu0 0.0
      %504 = vmatpush1.msra.mxu0 0.0
      %505 = vmatprep.subr.mxu0 0.0
      %506 = vmatpush1.msra.mxu0 0.0
      %507 = vmatprep.subr.mxu0 0.0
      %508 = vmatpush1.msra.mxu0 0.0
      %509 = vmatprep.subr.mxu0 0.0
      %510 = vmatpush1.msra.mxu0 0.0
      %511 = vmatprep.subr.mxu0 0.0
      %512 = vmatpush1.msra.mxu0 0.0
      %513 = vmatprep.subr.mxu0 0.0
      %514 = vmatpush1.msra.mxu0 0.0
      %515 = vmatprep.subr.mxu0 0.0
      %516 = vmatpush1.msra.mxu0 0.0
      %517 = vmatprep.subr.mxu0 0.0
      %518 = vmatpush1.msra.mxu0 0.0
      %519 = vmatprep.subr.mxu0 0.0
      %520 = vmatpush1.msra.mxu0 0.0
      %521 = vmatprep.subr.mxu0 0.0
      %522 = vmatpush1.msra.mxu0 0.0
      %523 = vmatprep.subr.mxu0 0.0
      %524 = vmatpush1.msra.mxu0 0.0
      %525 = vmatprep.subr.mxu0 0.0
      %526 = vmatpush1.msra.mxu0 0.0
      %527 = vmatprep.subr.mxu0 0.0
      %528 = vmatpush1.msra.mxu0 0.0
      %529 = vmatprep.subr.mxu0 0.0
      %530 = vmatpush1.msra.mxu0 0.0
      %531 = vmatprep.subr.mxu0 0.0
      %532 = vmatpush1.msra.mxu0 0.0
      %533 = vmatprep.subr.mxu0 0.0
      %534 = vmatpush1.msra.mxu0 0.0
      %535 = vmatprep.subr.mxu0 0.0
      %536 = vmatpush1.msra.mxu0 0.0
      %537 = vmatprep.subr.mxu0 0.0
      %538 = vmatpush1.msra.mxu0 0.0
      %539 = vmatprep.subr.mxu0 0.0
      %540 = vmatpush1.msra.mxu0 0.0
      %541 = vmatprep.mubr.f32.mxu0 0.0
      %542 = vmatmul.mubr.f32.gmra.mrb[0].mxu0 %v466
      %v543 = vpop.f32.mrb[0].mxu0
      %v544 = vadd.f32 0.0, %v543
      %v545 = vpop.f32.mrb[0].mxu0
      %546 = vmatprep.mubr.f32.mxu0 0.0
      %547 = vmatmul.mubr.f32.gmra.mrb[0].mxu0 %v469
      %v548 = vpop.f32.mrb[0].mxu0
      %v549 = vadd.f32 0.0, %v548
      %v550 = vpop.f32.mrb[0].mxu0
      %551 = vmatprep.mubr.f32.mxu0 0.0
      %552 = vmatmul.mubr.f32.gmra.mrb[0].mxu0 %v472
      %v553 = vpop.f32.mrb[0].mxu0
      %v554 = vadd.f32 0.0, %v553
      %v555 = vpop.f32.mrb[0].mxu0
      %556 = vmatprep.mubr.f32.mxu0 0.0
      %557 = vmatmul.mubr.f32.gmra.mrb[0].mxu0 %v475
      %v558 = vpop.f32.mrb[0].mxu0
      %v559 = vadd.f32 0.0, %v558
      %v560 = vpop.f32.mrb[0].mxu0
      %561 = vdwg.mxu0
      %566 = vrot.lane.b32.xlu0 %v456, 127
      %v567 = vpop.permute.xlu0 %566
      %568 = vrot.lane.b32.xlu0 %v457, 127
      %v569 = vpop.permute.xlu0 %568
      %570 = vrot.lane.b32.xlu0 %v458, 127
      %v571 = vpop.permute.xlu0 %570
      %572 = vrot.lane.b32.xlu0 %v459, 127
      %v573 = vpop.permute.xlu0 %572
      %v579 = vsel %vm464, %v452, 0
      %v582 = vsel %vm464, %v453, 0
      %v585 = vsel %vm464, %v454, 0
      %v588 = vsel %vm464, %v455, 0
      %590 = vmatprep.subr.mxu0 0.0
      %591 = vmatpush1.msra.mxu0 %v567
      %592 = vmatprep.subr.mxu0 0.0
      %593 = vmatpush1.msra.mxu0 %v569
      %594 = vmatprep.subr.mxu0 0.0
      %595 = vmatpush1.msra.mxu0 %v571
      %596 = vmatprep.subr.mxu0 0.0
      %597 = vmatpush1.msra.mxu0 %v573
      %598 = vmatprep.subr.mxu0 0.0
      %599 = vmatpush1.msra.mxu0 0.0
      %600 = vmatprep.subr.mxu0 0.0
      %601 = vmatpush1.msra.mxu0 0.0
      %602 = vmatprep.subr.mxu0 0.0
      %603 = vmatpush1.msra.mxu0 0.0
      %604 = vmatprep.subr.mxu0 0.0
      %605 = vmatpush1.msra.mxu0 0.0
      %606 = vmatprep.subr.mxu0 0.0
      %607 = vmatpush1.msra.mxu0 0.0
      %608 = vmatprep.subr.mxu0 0.0
      %609 = vmatpush1.msra.mxu0 0.0
      %610 = vmatprep.subr.mxu0 0.0
      %611 = vmatpush1.msra.mxu0 0.0
      %612 = vmatprep.subr.mxu0 0.0
      %613 = vmatpush1.msra.mxu0 0.0
      %614 = vmatprep.subr.mxu0 0.0
      %615 = vmatpush1.msra.mxu0 0.0
      %616 = vmatprep.subr.mxu0 0.0
      %617 = vmatpush1.msra.mxu0 0.0
      %618 = vmatprep.subr.mxu0 0.0
      %619 = vmatpush1.msra.mxu0 0.0
      %620 = vmatprep.subr.mxu0 0.0
      %621 = vmatpush1.msra.mxu0 0.0
      %622 = vmatprep.subr.mxu0 0.0
      %623 = vmatpush1.msra.mxu0 0.0
      %624 = vmatprep.subr.mxu0 0.0
      %625 = vmatpush1.msra.mxu0 0.0
      %626 = vmatprep.subr.mxu0 0.0
      %627 = vmatpush1.msra.mxu0 0.0
      %628 = vmatprep.subr.mxu0 0.0
      %629 = vmatpush1.msra.mxu0 0.0
      %630 = vmatprep.subr.mxu0 0.0
      %631 = vmatpush1.msra.mxu0 0.0
      %632 = vmatprep.subr.mxu0 0.0
      %633 = vmatpush1.msra.mxu0 0.0
      %634 = vmatprep.subr.mxu0 0.0
      %635 = vmatpush1.msra.mxu0 0.0
      %636 = vmatprep.subr.mxu0 0.0
      %637 = vmatpush1.msra.mxu0 0.0
      %638 = vmatprep.subr.mxu0 0.0
      %639 = vmatpush1.msra.mxu0 0.0
      %640 = vmatprep.subr.mxu0 0.0
      %641 = vmatpush1.msra.mxu0 0.0
      %642 = vmatprep.subr.mxu0 0.0
      %643 = vmatpush1.msra.mxu0 0.0
      %644 = vmatprep.subr.mxu0 0.0
      %645 = vmatpush1.msra.mxu0 0.0
      %646 = vmatprep.subr.mxu0 0.0
      %647 = vmatpush1.msra.mxu0 0.0
      %648 = vmatprep.subr.mxu0 0.0
      %649 = vmatpush1.msra.mxu0 0.0
      %650 = vmatprep.subr.mxu0 0.0
      %651 = vmatpush1.msra.mxu0 0.0
      %652 = vmatprep.subr.mxu0 0.0
      %653 = vmatpush1.msra.mxu0 0.0
      %654 = vmatprep.mubr.f32.mxu0 0.0
      %655 = vmatmul.mubr.f32.gmra.mrb[0].mxu0 %v579
      %v656 = vpop.f32.mrb[0].mxu0
      %v657 = vadd.f32 %v544, %v656
      %v658 = vpop.f32.mrb[0].mxu0
      %659 = vmatprep.mubr.f32.mxu0 0.0
      %660 = vmatmul.mubr.f32.gmra.mrb[0].mxu0 %v582
      %v661 = vpop.f32.mrb[0].mxu0
      %v662 = vadd.f32 %v549, %v661
      %v663 = vpop.f32.mrb[0].mxu0
      %664 = vmatprep.mubr.f32.mxu0 0.0
      %665 = vmatmul.mubr.f32.gmra.mrb[0].mxu0 %v585
      %v666 = vpop.f32.mrb[0].mxu0
      %v667 = vadd.f32 %v554, %v666
      %v668 = vpop.f32.mrb[0].mxu0
      %669 = vmatprep.mubr.f32.mxu0 0.0
      %670 = vmatmul.mubr.f32.gmra.mrb[0].mxu0 %v588
      %v671 = vpop.f32.mrb[0].mxu0
      %v672 = vadd.f32 %v559, %v671
      %v673 = vpop.f32.mrb[0].mxu0
      %674 = vdwg.mxu0
      %s675 = scalar_lea.vmem %s2, 64
      %v676 = vld [vmem:[%s675] sm:$0xff]
      %v677 = vld [vmem:[%s675 + $0x8] sm:$0xff]
      %v678 = vld [vmem:[%s675 + $0x10] sm:$0xff]
      %v679 = vld [vmem:[%s675 + $0x18] sm:$0xff]
      %680 = vrot.lane.b32.xlu0 %v456, 126
      %v681 = vpop.permute.xlu0 %680
      %682 = vrot.lane.b32.xlu0 %v457, 126
      %v683 = vpop.permute.xlu0 %682
      %684 = vrot.lane.b32.xlu0 %v458, 126
      %v685 = vpop.permute.xlu0 %684
      %686 = vrot.lane.b32.xlu0 %v459, 126
      %v687 = vpop.permute.xlu0 %686
      %v693 = vsel %vm464, %v676, 0
      %v696 = vsel %vm464, %v677, 0
      %v699 = vsel %vm464, %v678, 0
      %v702 = vsel %vm464, %v679, 0
      %704 = vmatprep.subr.mxu0 0.0
      %705 = vmatpush1.msra.mxu0 %v681
      %706 = vmatprep.subr.mxu0 0.0
      %707 = vmatpush1.msra.mxu0 %v683
      %708 = vmatprep.subr.mxu0 0.0
      %709 = vmatpush1.msra.mxu0 %v685
      %710 = vmatprep.subr.mxu0 0.0
      %711 = vmatpush1.msra.mxu0 %v687
      %712 = vmatprep.subr.mxu0 0.0
      %713 = vmatpush1.msra.mxu0 0.0
      %714 = vmatprep.subr.mxu0 0.0
      %715 = vmatpush1.msra.mxu0 0.0
      %716 = vmatprep.subr.mxu0 0.0
      %717 = vmatpush1.msra.mxu0 0.0
      %718 = vmatprep.subr.mxu0 0.0
      %719 = vmatpush1.msra.mxu0 0.0
      %720 = vmatprep.subr.mxu0 0.0
      %721 = vmatpush1.msra.mxu0 0.0
      %722 = vmatprep.subr.mxu0 0.0
      %723 = vmatpush1.msra.mxu0 0.0
      %724 = vmatprep.subr.mxu0 0.0
      %725 = vmatpush1.msra.mxu0 0.0
      %726 = vmatprep.subr.mxu0 0.0
      %727 = vmatpush1.msra.mxu0 0.0
      %728 = vmatprep.subr.mxu0 0.0
      %729 = vmatpush1.msra.mxu0 0.0
      %730 = vmatprep.subr.mxu0 0.0
      %731 = vmatpush1.msra.mxu0 0.0
      %732 = vmatprep.subr.mxu0 0.0
      %733 = vmatpush1.msra.mxu0 0.0
      %734 = vmatprep.subr.mxu0 0.0
      %735 = vmatpush1.msra.mxu0 0.0
      %736 = vmatprep.subr.mxu0 0.0
      %737 = vmatpush1.msra.mxu0 0.0
      %738 = vmatprep.subr.mxu0 0.0
      %739 = vmatpush1.msra.mxu0 0.0
      %740 = vmatprep.subr.mxu0 0.0
      %741 = vmatpush1.msra.mxu0 0.0
      %742 = vmatprep.subr.mxu0 0.0
      %743 = vmatpush1.msra.mxu0 0.0
      %744 = vmatprep.subr.mxu0 0.0
      %745 = vmatpush1.msra.mxu0 0.0
      %746 = vmatprep.subr.mxu0 0.0
      %747 = vmatpush1.msra.mxu0 0.0
      %748 = vmatprep.subr.mxu0 0.0
      %749 = vmatpush1.msra.mxu0 0.0
      %750 = vmatprep.subr.mxu0 0.0
      %751 = vmatpush1.msra.mxu0 0.0
      %752 = vmatprep.subr.mxu0 0.0
      %753 = vmatpush1.msra.mxu0 0.0
      %754 = vmatprep.subr.mxu0 0.0
      %755 = vmatpush1.msra.mxu0 0.0
      %756 = vmatprep.subr.mxu0 0.0
      %757 = vmatpush1.msra.mxu0 0.0
      %758 = vmatprep.subr.mxu0 0.0
      %759 = vmatpush1.msra.mxu0 0.0
      %760 = vmatprep.subr.mxu0 0.0
      %761 = vmatpush1.msra.mxu0 0.0
      %762 = vmatprep.subr.mxu0 0.0
      %763 = vmatpush1.msra.mxu0 0.0
      %764 = vmatprep.subr.mxu0 0.0
      %765 = vmatpush1.msra.mxu0 0.0
      %766 = vmatprep.subr.mxu0 0.0
      %767 = vmatpush1.msra.mxu0 0.0
      %768 = vmatprep.mubr.f32.mxu0 0.0
      %769 = vmatmul.mubr.f32.gmra.mrb[0].mxu0 %v693
      %v770 = vpop.f32.mrb[0].mxu0
      %v771 = vadd.f32 0.0, %v770
      %v772 = vpop.f32.mrb[0].mxu0
      %773 = vmatprep.mubr.f32.mxu0 0.0
      %774 = vmatmul.mubr.f32.gmra.mrb[0].mxu0 %v696
      %v775 = vpop.f32.mrb[0].mxu0
      %v776 = vadd.f32 0.0, %v775
      %v777 = vpop.f32.mrb[0].mxu0
      %778 = vmatprep.mubr.f32.mxu0 0.0
      %779 = vmatmul.mubr.f32.gmra.mrb[0].mxu0 %v699
      %v780 = vpop.f32.mrb[0].mxu0
      %v781 = vadd.f32 0.0, %v780
      %v782 = vpop.f32.mrb[0].mxu0
      %783 = vmatprep.mubr.f32.mxu0 0.0
      %784 = vmatmul.mubr.f32.gmra.mrb[0].mxu0 %v702
      %v785 = vpop.f32.mrb[0].mxu0
      %v786 = vadd.f32 0.0, %v785
      %v787 = vpop.f32.mrb[0].mxu0
      %788 = vdwg.mxu0
      %v789 = vadd.f32 %v657, %v771
      %v790 = vadd.f32 %v662, %v776
      %v791 = vadd.f32 %v667, %v781
      %v792 = vadd.f32 %v672, %v786
      %v793 = vld [vmem:[%s3] sm:$0xff]
      %v794 = vld [vmem:[%s3 + $0x8] sm:$0xff]
      %v795 = vld [vmem:[%s3 + $0x10] sm:$0xff]
      %v796 = vld [vmem:[%s3 + $0x18] sm:$0xff]
      %798 = vset.pattern.permute.xlu0 0
      %799 = vperm.xlu0 %798, %v793
      %v800 = vpop.permute.xlu0 %799
      %803 = vset.pattern.permute.xlu0 0
      %804 = vperm.xlu0 %803, %v794
      %v805 = vpop.permute.xlu0 %804
      %808 = vset.pattern.permute.xlu0 0
      %809 = vperm.xlu0 %808, %v795
      %v810 = vpop.permute.xlu0 %809
      %813 = vset.pattern.permute.xlu0 0
      %814 = vperm.xlu0 %813, %v796
      %v815 = vpop.permute.xlu0 %814
      %v817 = vadd.f32 %v789, %v800
      %v818 = vadd.f32 %v790, %v805
      %v819 = vadd.f32 %v791, %v810
      %v820 = vadd.f32 %v792, %v815
      %v821 = vmul.f32 %v817, %v424
      %v822 = vmul.f32 %v818, %v424
      %v823 = vmul.f32 %v819, %v424
      %v824 = vmul.f32 %v820, %v424
      %vm825 = vcmask 130048
      %v826 = vsel %vm825, %v821, 0.0
      %827 = vadd.xlane.f32.xlu0 %v826
      %v828 = vpop.xlane.xlu0 %827
      %v829 = vsel %vm825, %v822, 0.0
      %830 = vadd.xlane.f32.xlu0 %v829
      %v831 = vpop.xlane.xlu0 %830
      %v832 = vsel %vm825, %v823, 0.0
      %833 = vadd.xlane.f32.xlu0 %v832
      %v834 = vpop.xlane.xlu0 %833
      %v835 = vsel %vm825, %v824, 0.0
      %836 = vadd.xlane.f32.xlu0 %v835
      %v837 = vpop.xlane.xlu0 %836
      %v839 = vsel %vm464, %v406, 0
      %v842 = vsel %vm464, %v407, 0
      %v845 = vsel %vm464, %v408, 0
      %v848 = vsel %vm464, %v409, 0
      %850 = vmatprep.subr.mxu0 0.0
      %851 = vmatpush1.msra.mxu0 %v828
      %852 = vmatprep.subr.mxu0 0.0
      %853 = vmatpush1.msra.mxu0 %v831
      %854 = vmatprep.subr.mxu0 0.0
      %855 = vmatpush1.msra.mxu0 %v834
      %856 = vmatprep.subr.mxu0 0.0
      %857 = vmatpush1.msra.mxu0 %v837
      %858 = vmatprep.subr.mxu0 0.0
      %859 = vmatpush1.msra.mxu0 0.0
      %860 = vmatprep.subr.mxu0 0.0
      %861 = vmatpush1.msra.mxu0 0.0
      %862 = vmatprep.subr.mxu0 0.0
      %863 = vmatpush1.msra.mxu0 0.0
      %864 = vmatprep.subr.mxu0 0.0
      %865 = vmatpush1.msra.mxu0 0.0
      %866 = vmatprep.subr.mxu0 0.0
      %867 = vmatpush1.msra.mxu0 0.0
      %868 = vmatprep.subr.mxu0 0.0
      %869 = vmatpush1.msra.mxu0 0.0
      %870 = vmatprep.subr.mxu0 0.0
      %871 = vmatpush1.msra.mxu0 0.0
      %872 = vmatprep.subr.mxu0 0.0
      %873 = vmatpush1.msra.mxu0 0.0
      %874 = vmatprep.subr.mxu0 0.0
      %875 = vmatpush1.msra.mxu0 0.0
      %876 = vmatprep.subr.mxu0 0.0
      %877 = vmatpush1.msra.mxu0 0.0
      %878 = vmatprep.subr.mxu0 0.0
      %879 = vmatpush1.msra.mxu0 0.0
      %880 = vmatprep.subr.mxu0 0.0
      %881 = vmatpush1.msra.mxu0 0.0
      %882 = vmatprep.subr.mxu0 0.0
      %883 = vmatpush1.msra.mxu0 0.0
      %884 = vmatprep.subr.mxu0 0.0
      %885 = vmatpush1.msra.mxu0 0.0
      %886 = vmatprep.subr.mxu0 0.0
      %887 = vmatpush1.msra.mxu0 0.0
      %888 = vmatprep.subr.mxu0 0.0
      %889 = vmatpush1.msra.mxu0 0.0
      %890 = vmatprep.subr.mxu0 0.0
      %891 = vmatpush1.msra.mxu0 0.0
      %892 = vmatprep.subr.mxu0 0.0
      %893 = vmatpush1.msra.mxu0 0.0
      %894 = vmatprep.subr.mxu0 0.0
      %895 = vmatpush1.msra.mxu0 0.0
      %896 = vmatprep.subr.mxu0 0.0
      %897 = vmatpush1.msra.mxu0 0.0
      %898 = vmatprep.subr.mxu0 0.0
      %899 = vmatpush1.msra.mxu0 0.0
      %900 = vmatprep.subr.mxu0 0.0
      %901 = vmatpush1.msra.mxu0 0.0
      %902 = vmatprep.subr.mxu0 0.0
      %903 = vmatpush1.msra.mxu0 0.0
      %904 = vmatprep.subr.mxu0 0.0
      %905 = vmatpush1.msra.mxu0 0.0
      %906 = vmatprep.subr.mxu0 0.0
      %907 = vmatpush1.msra.mxu0 0.0
      %908 = vmatprep.subr.mxu0 0.0
      %909 = vmatpush1.msra.mxu0 0.0
      %910 = vmatprep.subr.mxu0 0.0
      %911 = vmatpush1.msra.mxu0 0.0
      %912 = vmatprep.subr.mxu0 0.0
      %913 = vmatpush1.msra.mxu0 0.0
      %914 = vmatprep.mubr.f32.mxu0 0.0
      %915 = vmatmul.mubr.f32.gmra.mrb[0].mxu0 %v839
      %v916 = vpop.f32.mrb[0].mxu0
      %v917 = vadd.f32 0.0, %v916
      %v918 = vpop.f32.mrb[0].mxu0
      %919 = vmatprep.mubr.f32.mxu0 0.0
      %920 = vmatmul.mubr.f32.gmra.mrb[0].mxu0 %v842
      %v921 = vpop.f32.mrb[0].mxu0
      %v922 = vadd.f32 0.0, %v921
      %v923 = vpop.f32.mrb[0].mxu0
      %924 = vmatprep.mubr.f32.mxu0 0.0
      %925 = vmatmul.mubr.f32.gmra.mrb[0].mxu0 %v845
      %v926 = vpop.f32.mrb[0].mxu0
      %v927 = vadd.f32 0.0, %v926
      %v928 = vpop.f32.mrb[0].mxu0
      %929 = vmatprep.mubr.f32.mxu0 0.0
      %930 = vmatmul.mubr.f32.gmra.mrb[0].mxu0 %v848
      %v931 = vpop.f32.mrb[0].mxu0
      %v932 = vadd.f32 0.0, %v931
      %v933 = vpop.f32.mrb[0].mxu0
      %934 = vdwg.mxu0
      %936 = vset.pattern.permute.xlu0 0
      %937 = vperm.xlu0 %936, %v917
      %v938 = vpop.permute.xlu0 %937
      %941 = vset.pattern.permute.xlu0 0
      %942 = vperm.xlu0 %941, %v922
      %v943 = vpop.permute.xlu0 %942
      %946 = vset.pattern.permute.xlu0 0
      %947 = vperm.xlu0 %946, %v927
      %v948 = vpop.permute.xlu0 %947
      %951 = vset.pattern.permute.xlu0 0
      %952 = vperm.xlu0 %951, %v932
      %v953 = vpop.permute.xlu0 %952
      %v955 = vsub.f32 %v821, %v938
      %v956 = vsub.f32 %v822, %v943
      %v957 = vsub.f32 %v823, %v948
      %v958 = vsub.f32 %v824, %v953
      %v959 = vmul.f32 %v955, %v955
      %v960 = vmul.f32 %v956, %v956
      %v961 = vmul.f32 %v957, %v957
      %v962 = vmul.f32 %v958, %v958
      %v963 = vsel %vm825, %v959, 0.0
      %964 = vadd.xlane.f32.xlu0 %v963
      %v965 = vpop.xlane.xlu0 %964
      %v966 = vsel %vm825, %v960, 0.0
      %967 = vadd.xlane.f32.xlu0 %v966
      %v968 = vpop.xlane.xlu0 %967
      %v969 = vsel %vm825, %v961, 0.0
      %970 = vadd.xlane.f32.xlu0 %v969
      %v971 = vpop.xlane.xlu0 %970
      %v972 = vsel %vm825, %v962, 0.0
      %973 = vadd.xlane.f32.xlu0 %v972
      %v974 = vpop.xlane.xlu0 %973
      %975 = vmatprep.subr.mxu0 0.0
      %976 = vmatpush1.msra.mxu0 %v965
      %977 = vmatprep.subr.mxu0 0.0
      %978 = vmatpush1.msra.mxu0 %v968
      %979 = vmatprep.subr.mxu0 0.0
      %980 = vmatpush1.msra.mxu0 %v971
      %981 = vmatprep.subr.mxu0 0.0
      %982 = vmatpush1.msra.mxu0 %v974
      %983 = vmatprep.subr.mxu0 0.0
      %984 = vmatpush1.msra.mxu0 0.0
      %985 = vmatprep.subr.mxu0 0.0
      %986 = vmatpush1.msra.mxu0 0.0
      %987 = vmatprep.subr.mxu0 0.0
      %988 = vmatpush1.msra.mxu0 0.0
      %989 = vmatprep.subr.mxu0 0.0
      %990 = vmatpush1.msra.mxu0 0.0
      %991 = vmatprep.subr.mxu0 0.0
      %992 = vmatpush1.msra.mxu0 0.0
      %993 = vmatprep.subr.mxu0 0.0
      %994 = vmatpush1.msra.mxu0 0.0
      %995 = vmatprep.subr.mxu0 0.0
      %996 = vmatpush1.msra.mxu0 0.0
      %997 = vmatprep.subr.mxu0 0.0
      %998 = vmatpush1.msra.mxu0 0.0
      %999 = vmatprep.subr.mxu0 0.0
      %1000 = vmatpush1.msra.mxu0 0.0
      %1001 = vmatprep.subr.mxu0 0.0
      %1002 = vmatpush1.msra.mxu0 0.0
      %1003 = vmatprep.subr.mxu0 0.0
      %1004 = vmatpush1.msra.mxu0 0.0
      %1005 = vmatprep.subr.mxu0 0.0
      %1006 = vmatpush1.msra.mxu0 0.0
      %1007 = vmatprep.subr.mxu0 0.0
      %1008 = vmatpush1.msra.mxu0 0.0
      %1009 = vmatprep.subr.mxu0 0.0
      %1010 = vmatpush1.msra.mxu0 0.0
      %1011 = vmatprep.subr.mxu0 0.0
      %1012 = vmatpush1.msra.mxu0 0.0
      %1013 = vmatprep.subr.mxu0 0.0
      %1014 = vmatpush1.msra.mxu0 0.0
      %1015 = vmatprep.subr.mxu0 0.0
      %1016 = vmatpush1.msra.mxu0 0.0
      %1017 = vmatprep.subr.mxu0 0.0
      %1018 = vmatpush1.msra.mxu0 0.0
      %1019 = vmatprep.subr.mxu0 0.0
      %1020 = vmatpush1.msra.mxu0 0.0
      %1021 = vmatprep.subr.mxu0 0.0
      %1022 = vmatpush1.msra.mxu0 0.0
      %1023 = vmatprep.subr.mxu0 0.0
      %1024 = vmatpush1.msra.mxu0 0.0
      %1025 = vmatprep.subr.mxu0 0.0
      %1026 = vmatpush1.msra.mxu0 0.0
      %1027 = vmatprep.subr.mxu0 0.0
      %1028 = vmatpush1.msra.mxu0 0.0
      %1029 = vmatprep.subr.mxu0 0.0
      %1030 = vmatpush1.msra.mxu0 0.0
      %1031 = vmatprep.subr.mxu0 0.0
      %1032 = vmatpush1.msra.mxu0 0.0
      %1033 = vmatprep.subr.mxu0 0.0
      %1034 = vmatpush1.msra.mxu0 0.0
      %1035 = vmatprep.subr.mxu0 0.0
      %1036 = vmatpush1.msra.mxu0 0.0
      %1037 = vmatprep.subr.mxu0 0.0
      %1038 = vmatpush1.msra.mxu0 0.0
      %1039 = vmatprep.mubr.f32.mxu0 0.0
      %1040 = vmatmul.mubr.f32.gmra.mrb[0].mxu0 %v839
      %v1041 = vpop.f32.mrb[0].mxu0
      %v1042 = vadd.f32 1e-05, %v1041
      %v1043 = vpop.f32.mrb[0].mxu0
      %1044 = vmatprep.mubr.f32.mxu0 0.0
      %1045 = vmatmul.mubr.f32.gmra.mrb[0].mxu0 %v842
      %v1046 = vpop.f32.mrb[0].mxu0
      %v1047 = vadd.f32 1e-05, %v1046
      %v1048 = vpop.f32.mrb[0].mxu0
      %1049 = vmatprep.mubr.f32.mxu0 0.0
      %1050 = vmatmul.mubr.f32.gmra.mrb[0].mxu0 %v845
      %v1051 = vpop.f32.mrb[0].mxu0
      %v1052 = vadd.f32 1e-05, %v1051
      %v1053 = vpop.f32.mrb[0].mxu0
      %1054 = vmatprep.mubr.f32.mxu0 0.0
      %1055 = vmatmul.mubr.f32.gmra.mrb[0].mxu0 %v848
      %v1056 = vpop.f32.mrb[0].mxu0
      %v1057 = vadd.f32 1e-05, %v1056
      %v1058 = vpop.f32.mrb[0].mxu0
      %1059 = vdwg.mxu0
      %v1060 = vrsqrt.pop %v1042
      %v1061 = vrsqrt.pop %v1047
      %v1062 = vrsqrt.pop %v1052
      %v1063 = vrsqrt.pop %v1057
      %1065 = vset.pattern.permute.xlu0 0
      %1066 = vperm.xlu0 %1065, %v1060
      %v1067 = vpop.permute.xlu0 %1066
      %1070 = vset.pattern.permute.xlu0 0
      %1071 = vperm.xlu0 %1070, %v1061
      %v1072 = vpop.permute.xlu0 %1071
      %1075 = vset.pattern.permute.xlu0 0
      %1076 = vperm.xlu0 %1075, %v1062
      %v1077 = vpop.permute.xlu0 %1076
      %1080 = vset.pattern.permute.xlu0 0
      %1081 = vperm.xlu0 %1080, %v1063
      %v1082 = vpop.permute.xlu0 %1081
      %v1084 = vmul.f32 %v955, %v1067
      %v1085 = vmul.f32 %v956, %v1072
      %v1086 = vmul.f32 %v957, %v1077
      %v1087 = vmul.f32 %v958, %v1082
      %v1088 = vld [vmem:[%s4] sm:$0xff]
      %v1089 = vld [vmem:[%s4 + $0x8] sm:$0xff]
      %v1090 = vld [vmem:[%s4 + $0x10] sm:$0xff]
      %v1091 = vld [vmem:[%s4 + $0x18] sm:$0xff]
      %1093 = vset.pattern.permute.xlu0 0
      %1094 = vperm.xlu0 %1093, %v1088
      %v1095 = vpop.permute.xlu0 %1094
      %1098 = vset.pattern.permute.xlu0 0
      %1099 = vperm.xlu0 %1098, %v1089
      %v1100 = vpop.permute.xlu0 %1099
      %1103 = vset.pattern.permute.xlu0 0
      %1104 = vperm.xlu0 %1103, %v1090
      %v1105 = vpop.permute.xlu0 %1104
      %1108 = vset.pattern.permute.xlu0 0
      %1109 = vperm.xlu0 %1108, %v1091
      %v1110 = vpop.permute.xlu0 %1109
      %v1112 = vmul.f32 %v1084, %v1095
      %v1113 = vmul.f32 %v1085, %v1100
      %v1114 = vmul.f32 %v1086, %v1105
      %v1115 = vmul.f32 %v1087, %v1110
      %v1116 = vld [vmem:[%s5] sm:$0xff]
      %v1117 = vld [vmem:[%s5 + $0x8] sm:$0xff]
      %v1118 = vld [vmem:[%s5 + $0x10] sm:$0xff]
      %v1119 = vld [vmem:[%s5 + $0x18] sm:$0xff]
      %1121 = vset.pattern.permute.xlu0 0
      %1122 = vperm.xlu0 %1121, %v1116
      %v1123 = vpop.permute.xlu0 %1122
      %1126 = vset.pattern.permute.xlu0 0
      %1127 = vperm.xlu0 %1126, %v1117
      %v1128 = vpop.permute.xlu0 %1127
      %1131 = vset.pattern.permute.xlu0 0
      %1132 = vperm.xlu0 %1131, %v1118
      %v1133 = vpop.permute.xlu0 %1132
      %1136 = vset.pattern.permute.xlu0 0
      %1137 = vperm.xlu0 %1136, %v1119
      %v1138 = vpop.permute.xlu0 %1137
      %v1140 = vadd.f32 %v1112, %v1123
      %v1141 = vadd.f32 %v1113, %v1128
      %v1142 = vadd.f32 %v1114, %v1133
      %v1143 = vadd.f32 %v1115, %v1138
      %v1144 = vxor.u32 %v1140, 2147483648
      %v1145 = vxor.u32 %v1141, 2147483648
      %v1146 = vxor.u32 %v1142, 2147483648
      %v1147 = vxor.u32 %v1143, 2147483648
      %v1148 = vmul.f32 %v1144, 1.442695
      %v1149 = vpow.pop %v1148
      %v1150 = vmul.f32 %v1145, 1.442695
      %v1151 = vpow.pop %v1150
      %v1152 = vmul.f32 %v1146, 1.442695
      %v1153 = vpow.pop %v1152
      %v1154 = vmul.f32 %v1147, 1.442695
      %v1155 = vpow.pop %v1154
      %v1156 = vadd.f32 %v1149, 1.0
      %v1157 = vadd.f32 %v1151, 1.0
      %v1158 = vadd.f32 %v1153, 1.0
      %v1159 = vadd.f32 %v1155, 1.0
      %v1160 = vrcp.pop %v1156
      %v1161 = vmul.f32 1.0, %v1160
      %v1162 = vrcp.pop %v1157
      %v1163 = vmul.f32 1.0, %v1162
      %v1164 = vrcp.pop %v1158
      %v1165 = vmul.f32 1.0, %v1164
      %v1166 = vrcp.pop %v1159
      %v1167 = vmul.f32 1.0, %v1166
      %v1168 = vmul.f32 %v1140, %v1161
      %v1169 = vmul.f32 %v1141, %v1163
      %v1170 = vmul.f32 %v1142, %v1165
      %v1171 = vmul.f32 %v1143, %v1167
      %v1172 = vmul.f32 %v1168, %v424
      %v1173 = vmul.f32 %v1169, %v424
      %v1174 = vmul.f32 %v1170, %v424
      %v1175 = vmul.f32 %v1171, %v424
      %1180 = vrot.lane.b32.xlu0 %v1172, 1
      %v1181 = vpop.permute.xlu0 %1180
      %1182 = vrot.lane.b32.xlu0 %v1173, 1
      %v1183 = vpop.permute.xlu0 %1182
      %1184 = vrot.lane.b32.xlu0 %v1174, 1
      %v1185 = vpop.permute.xlu0 %1184
      %1186 = vrot.lane.b32.xlu0 %v1175, 1
      %v1187 = vpop.permute.xlu0 %1186
      %1192 = vst.msk [vmem:[#allocation2] sm:$0xff] %vm446, %v1181
      %1193 = vst.msk [vmem:[#allocation2 + $0x8] sm:$0xff] %vm446, %v1183
      %1194 = vst.msk [vmem:[#allocation2 + $0x10] sm:$0xff] %vm446, %v1185
      %1195 = vst.msk [vmem:[#allocation2 + $0x18] sm:$0xff] %vm446, %v1187
      %s1196 = scalar_lea.vmem %s6, 32
      %v1197 = vld [vmem:[%s1196] sm:$0xff]
      %v1198 = vld [vmem:[%s1196 + $0x8] sm:$0xff]
      %v1199 = vld [vmem:[%s1196 + $0x10] sm:$0xff]
      %v1200 = vld [vmem:[%s1196 + $0x18] sm:$0xff]
      %v1201 = vld [vmem:[#allocation2] sm:$0xff]
      %v1202 = vld [vmem:[#allocation2 + $0x8] sm:$0xff]
      %v1203 = vld [vmem:[#allocation2 + $0x10] sm:$0xff]
      %v1204 = vld [vmem:[#allocation2 + $0x18] sm:$0xff]
      %v1205 = vld [vmem:[%s6] sm:$0xff]
      %v1206 = vld [vmem:[%s6 + $0x8] sm:$0xff]
      %v1207 = vld [vmem:[%s6 + $0x10] sm:$0xff]
      %v1208 = vld [vmem:[%s6 + $0x18] sm:$0xff]
      %v1210 = vsel %vm464, %v1205, 0
      %v1213 = vsel %vm464, %v1206, 0
      %v1216 = vsel %vm464, %v1207, 0
      %v1219 = vsel %vm464, %v1208, 0
      %1221 = vmatprep.subr.mxu0 0.0
      %1222 = vmatpush1.msra.mxu0 %v1201
      %1223 = vmatprep.subr.mxu0 0.0
      %1224 = vmatpush1.msra.mxu0 %v1202
      %1225 = vmatprep.subr.mxu0 0.0
      %1226 = vmatpush1.msra.mxu0 %v1203
      %1227 = vmatprep.subr.mxu0 0.0
      %1228 = vmatpush1.msra.mxu0 %v1204
      %1229 = vmatprep.subr.mxu0 0.0
      %1230 = vmatpush1.msra.mxu0 0.0
      %1231 = vmatprep.subr.mxu0 0.0
      %1232 = vmatpush1.msra.mxu0 0.0
      %1233 = vmatprep.subr.mxu0 0.0
      %1234 = vmatpush1.msra.mxu0 0.0
      %1235 = vmatprep.subr.mxu0 0.0
      %1236 = vmatpush1.msra.mxu0 0.0
      %1237 = vmatprep.subr.mxu0 0.0
      %1238 = vmatpush1.msra.mxu0 0.0
      %1239 = vmatprep.subr.mxu0 0.0
      %1240 = vmatpush1.msra.mxu0 0.0
      %1241 = vmatprep.subr.mxu0 0.0
      %1242 = vmatpush1.msra.mxu0 0.0
      %1243 = vmatprep.subr.mxu0 0.0
      %1244 = vmatpush1.msra.mxu0 0.0
      %1245 = vmatprep.subr.mxu0 0.0
      %1246 = vmatpush1.msra.mxu0 0.0
      %1247 = vmatprep.subr.mxu0 0.0
      %1248 = vmatpush1.msra.mxu0 0.0
      %1249 = vmatprep.subr.mxu0 0.0
      %1250 = vmatpush1.msra.mxu0 0.0
      %1251 = vmatprep.subr.mxu0 0.0
      %1252 = vmatpush1.msra.mxu0 0.0
      %1253 = vmatprep.subr.mxu0 0.0
      %1254 = vmatpush1.msra.mxu0 0.0
      %1255 = vmatprep.subr.mxu0 0.0
      %1256 = vmatpush1.msra.mxu0 0.0
      %1257 = vmatprep.subr.mxu0 0.0
      %1258 = vmatpush1.msra.mxu0 0.0
      %1259 = vmatprep.subr.mxu0 0.0
      %1260 = vmatpush1.msra.mxu0 0.0
      %1261 = vmatprep.subr.mxu0 0.0
      %1262 = vmatpush1.msra.mxu0 0.0
      %1263 = vmatprep.subr.mxu0 0.0
      %1264 = vmatpush1.msra.mxu0 0.0
      %1265 = vmatprep.subr.mxu0 0.0
      %1266 = vmatpush1.msra.mxu0 0.0
      %1267 = vmatprep.subr.mxu0 0.0
      %1268 = vmatpush1.msra.mxu0 0.0
      %1269 = vmatprep.subr.mxu0 0.0
      %1270 = vmatpush1.msra.mxu0 0.0
      %1271 = vmatprep.subr.mxu0 0.0
      %1272 = vmatpush1.msra.mxu0 0.0
      %1273 = vmatprep.subr.mxu0 0.0
      %1274 = vmatpush1.msra.mxu0 0.0
      %1275 = vmatprep.subr.mxu0 0.0
      %1276 = vmatpush1.msra.mxu0 0.0
      %1277 = vmatprep.subr.mxu0 0.0
      %1278 = vmatpush1.msra.mxu0 0.0
      %1279 = vmatprep.subr.mxu0 0.0
      %1280 = vmatpush1.msra.mxu0 0.0
      %1281 = vmatprep.subr.mxu0 0.0
      %1282 = vmatpush1.msra.mxu0 0.0
      %1283 = vmatprep.subr.mxu0 0.0
      %1284 = vmatpush1.msra.mxu0 0.0
      %1285 = vmatprep.mubr.f32.mxu0 0.0
      %1286 = vmatmul.mubr.f32.gmra.mrb[0].mxu0 %v1210
      %v1287 = vpop.f32.mrb[0].mxu0
      %v1288 = vadd.f32 0.0, %v1287
      %v1289 = vpop.f32.mrb[0].mxu0
      %1290 = vmatprep.mubr.f32.mxu0 0.0
      %1291 = vmatmul.mubr.f32.gmra.mrb[0].mxu0 %v1213
      %v1292 = vpop.f32.mrb[0].mxu0
      %v1293 = vadd.f32 0.0, %v1292
      %v1294 = vpop.f32.mrb[0].mxu0
      %1295 = vmatprep.mubr.f32.mxu0 0.0
      %1296 = vmatmul.mubr.f32.gmra.mrb[0].mxu0 %v1216
      %v1297 = vpop.f32.mrb[0].mxu0
      %v1298 = vadd.f32 0.0, %v1297
      %v1299 = vpop.f32.mrb[0].mxu0
      %1300 = vmatprep.mubr.f32.mxu0 0.0
      %1301 = vmatmul.mubr.f32.gmra.mrb[0].mxu0 %v1219
      %v1302 = vpop.f32.mrb[0].mxu0
      %v1303 = vadd.f32 0.0, %v1302
      %v1304 = vpop.f32.mrb[0].mxu0
      %1305 = vdwg.mxu0
      %1310 = vrot.lane.b32.xlu0 %v1201, 127
      %v1311 = vpop.permute.xlu0 %1310
      %1312 = vrot.lane.b32.xlu0 %v1202, 127
      %v1313 = vpop.permute.xlu0 %1312
      %1314 = vrot.lane.b32.xlu0 %v1203, 127
      %v1315 = vpop.permute.xlu0 %1314
      %1316 = vrot.lane.b32.xlu0 %v1204, 127
      %v1317 = vpop.permute.xlu0 %1316
      %v1323 = vsel %vm464, %v1197, 0
      %v1326 = vsel %vm464, %v1198, 0
      %v1329 = vsel %vm464, %v1199, 0
      %v1332 = vsel %vm464, %v1200, 0
      %1334 = vmatprep.subr.mxu0 0.0
      %1335 = vmatpush1.msra.mxu0 %v1311
      %1336 = vmatprep.subr.mxu0 0.0
      %1337 = vmatpush1.msra.mxu0 %v1313
      %1338 = vmatprep.subr.mxu0 0.0
      %1339 = vmatpush1.msra.mxu0 %v1315
      %1340 = vmatprep.subr.mxu0 0.0
      %1341 = vmatpush1.msra.mxu0 %v1317
      %1342 = vmatprep.subr.mxu0 0.0
      %1343 = vmatpush1.msra.mxu0 0.0
      %1344 = vmatprep.subr.mxu0 0.0
      %1345 = vmatpush1.msra.mxu0 0.0
      %1346 = vmatprep.subr.mxu0 0.0
      %1347 = vmatpush1.msra.mxu0 0.0
      %1348 = vmatprep.subr.mxu0 0.0
      %1349 = vmatpush1.msra.mxu0 0.0
      %1350 = vmatprep.subr.mxu0 0.0
      %1351 = vmatpush1.msra.mxu0 0.0
      %1352 = vmatprep.subr.mxu0 0.0
      %1353 = vmatpush1.msra.mxu0 0.0
      %1354 = vmatprep.subr.mxu0 0.0
      %1355 = vmatpush1.msra.mxu0 0.0
      %1356 = vmatprep.subr.mxu0 0.0
      %1357 = vmatpush1.msra.mxu0 0.0
      %1358 = vmatprep.subr.mxu0 0.0
      %1359 = vmatpush1.msra.mxu0 0.0
      %1360 = vmatprep.subr.mxu0 0.0
      %1361 = vmatpush1.msra.mxu0 0.0
      %1362 = vmatprep.subr.mxu0 0.0
      %1363 = vmatpush1.msra.mxu0 0.0
      %1364 = vmatprep.subr.mxu0 0.0
      %1365 = vmatpush1.msra.mxu0 0.0
      %1366 = vmatprep.subr.mxu0 0.0
      %1367 = vmatpush1.msra.mxu0 0.0
      %1368 = vmatprep.subr.mxu0 0.0
      %1369 = vmatpush1.msra.mxu0 0.0
      %1370 = vmatprep.subr.mxu0 0.0
      %1371 = vmatpush1.msra.mxu0 0.0
      %1372 = vmatprep.subr.mxu0 0.0
      %1373 = vmatpush1.msra.mxu0 0.0
      %1374 = vmatprep.subr.mxu0 0.0
      %1375 = vmatpush1.msra.mxu0 0.0
      %1376 = vmatprep.subr.mxu0 0.0
      %1377 = vmatpush1.msra.mxu0 0.0
      %1378 = vmatprep.subr.mxu0 0.0
      %1379 = vmatpush1.msra.mxu0 0.0
      %1380 = vmatprep.subr.mxu0 0.0
      %1381 = vmatpush1.msra.mxu0 0.0
      %1382 = vmatprep.subr.mxu0 0.0
      %1383 = vmatpush1.msra.mxu0 0.0
      %1384 = vmatprep.subr.mxu0 0.0
      %1385 = vmatpush1.msra.mxu0 0.0
      %1386 = vmatprep.subr.mxu0 0.0
      %1387 = vmatpush1.msra.mxu0 0.0
      %1388 = vmatprep.subr.mxu0 0.0
      %1389 = vmatpush1.msra.mxu0 0.0
      %1390 = vmatprep.subr.mxu0 0.0
      %1391 = vmatpush1.msra.mxu0 0.0
      %1392 = vmatprep.subr.mxu0 0.0
      %1393 = vmatpush1.msra.mxu0 0.0
      %1394 = vmatprep.subr.mxu0 0.0
      %1395 = vmatpush1.msra.mxu0 0.0
      %1396 = vmatprep.subr.mxu0 0.0
      %1397 = vmatpush1.msra.mxu0 0.0
      %1398 = vmatprep.mubr.f32.mxu0 0.0
      %1399 = vmatmul.mubr.f32.gmra.mrb[0].mxu0 %v1323
      %v1400 = vpop.f32.mrb[0].mxu0
      %v1401 = vadd.f32 %v1288, %v1400
      %v1402 = vpop.f32.mrb[0].mxu0
      %1403 = vmatprep.mubr.f32.mxu0 0.0
      %1404 = vmatmul.mubr.f32.gmra.mrb[0].mxu0 %v1326
      %v1405 = vpop.f32.mrb[0].mxu0
      %v1406 = vadd.f32 %v1293, %v1405
      %v1407 = vpop.f32.mrb[0].mxu0
      %1408 = vmatprep.mubr.f32.mxu0 0.0
      %1409 = vmatmul.mubr.f32.gmra.mrb[0].mxu0 %v1329
      %v1410 = vpop.f32.mrb[0].mxu0
      %v1411 = vadd.f32 %v1298, %v1410
      %v1412 = vpop.f32.mrb[0].mxu0
      %1413 = vmatprep.mubr.f32.mxu0 0.0
      %1414 = vmatmul.mubr.f32.gmra.mrb[0].mxu0 %v1332
      %v1415 = vpop.f32.mrb[0].mxu0
      %v1416 = vadd.f32 %v1303, %v1415
      %v1417 = vpop.f32.mrb[0].mxu0
      %1418 = vdwg.mxu0
      %s1419 = scalar_lea.vmem %s6, 64
      %v1420 = vld [vmem:[%s1419] sm:$0xff]
      %v1421 = vld [vmem:[%s1419 + $0x8] sm:$0xff]
      %v1422 = vld [vmem:[%s1419 + $0x10] sm:$0xff]
      %v1423 = vld [vmem:[%s1419 + $0x18] sm:$0xff]
      %1424 = vrot.lane.b32.xlu0 %v1201, 126
      %v1425 = vpop.permute.xlu0 %1424
      %1426 = vrot.lane.b32.xlu0 %v1202, 126
      %v1427 = vpop.permute.xlu0 %1426
      %1428 = vrot.lane.b32.xlu0 %v1203, 126
      %v1429 = vpop.permute.xlu0 %1428
      %1430 = vrot.lane.b32.xlu0 %v1204, 126
      %v1431 = vpop.permute.xlu0 %1430
      %v1437 = vsel %vm464, %v1420, 0
      %v1440 = vsel %vm464, %v1421, 0
      %v1443 = vsel %vm464, %v1422, 0
      %v1446 = vsel %vm464, %v1423, 0
      %1448 = vmatprep.subr.mxu0 0.0
      %1449 = vmatpush1.msra.mxu0 %v1425
      %1450 = vmatprep.subr.mxu0 0.0
      %1451 = vmatpush1.msra.mxu0 %v1427
      %1452 = vmatprep.subr.mxu0 0.0
      %1453 = vmatpush1.msra.mxu0 %v1429
      %1454 = vmatprep.subr.mxu0 0.0
      %1455 = vmatpush1.msra.mxu0 %v1431
      %1456 = vmatprep.subr.mxu0 0.0
      %1457 = vmatpush1.msra.mxu0 0.0
      %1458 = vmatprep.subr.mxu0 0.0
      %1459 = vmatpush1.msra.mxu0 0.0
      %1460 = vmatprep.subr.mxu0 0.0
      %1461 = vmatpush1.msra.mxu0 0.0
      %1462 = vmatprep.subr.mxu0 0.0
      %1463 = vmatpush1.msra.mxu0 0.0
      %1464 = vmatprep.subr.mxu0 0.0
      %1465 = vmatpush1.msra.mxu0 0.0
      %1466 = vmatprep.subr.mxu0 0.0
      %1467 = vmatpush1.msra.mxu0 0.0
      %1468 = vmatprep.subr.mxu0 0.0
      %1469 = vmatpush1.msra.mxu0 0.0
      %1470 = vmatprep.subr.mxu0 0.0
      %1471 = vmatpush1.msra.mxu0 0.0
      %1472 = vmatprep.subr.mxu0 0.0
      %1473 = vmatpush1.msra.mxu0 0.0
      %1474 = vmatprep.subr.mxu0 0.0
      %1475 = vmatpush1.msra.mxu0 0.0
      %1476 = vmatprep.subr.mxu0 0.0
      %1477 = vmatpush1.msra.mxu0 0.0
      %1478 = vmatprep.subr.mxu0 0.0
      %1479 = vmatpush1.msra.mxu0 0.0
      %1480 = vmatprep.subr.mxu0 0.0
      %1481 = vmatpush1.msra.mxu0 0.0
      %1482 = vmatprep.subr.mxu0 0.0
      %1483 = vmatpush1.msra.mxu0 0.0
      %1484 = vmatprep.subr.mxu0 0.0
      %1485 = vmatpush1.msra.mxu0 0.0
      %1486 = vmatprep.subr.mxu0 0.0
      %1487 = vmatpush1.msra.mxu0 0.0
      %1488 = vmatprep.subr.mxu0 0.0
      %1489 = vmatpush1.msra.mxu0 0.0
      %1490 = vmatprep.subr.mxu0 0.0
      %1491 = vmatpush1.msra.mxu0 0.0
      %1492 = vmatprep.subr.mxu0 0.0
      %1493 = vmatpush1.msra.mxu0 0.0
      %1494 = vmatprep.subr.mxu0 0.0
      %1495 = vmatpush1.msra.mxu0 0.0
      %1496 = vmatprep.subr.mxu0 0.0
      %1497 = vmatpush1.msra.mxu0 0.0
      %1498 = vmatprep.subr.mxu0 0.0
      %1499 = vmatpush1.msra.mxu0 0.0
      %1500 = vmatprep.subr.mxu0 0.0
      %1501 = vmatpush1.msra.mxu0 0.0
      %1502 = vmatprep.subr.mxu0 0.0
      %1503 = vmatpush1.msra.mxu0 0.0
      %1504 = vmatprep.subr.mxu0 0.0
      %1505 = vmatpush1.msra.mxu0 0.0
      %1506 = vmatprep.subr.mxu0 0.0
      %1507 = vmatpush1.msra.mxu0 0.0
      %1508 = vmatprep.subr.mxu0 0.0
      %1509 = vmatpush1.msra.mxu0 0.0
      %1510 = vmatprep.subr.mxu0 0.0
      %1511 = vmatpush1.msra.mxu0 0.0
      %1512 = vmatprep.mubr.f32.mxu0 0.0
      %1513 = vmatmul.mubr.f32.gmra.mrb[0].mxu0 %v1437
      %v1514 = vpop.f32.mrb[0].mxu0
      %v1515 = vadd.f32 0.0, %v1514
      %v1516 = vpop.f32.mrb[0].mxu0
      %1517 = vmatprep.mubr.f32.mxu0 0.0
      %1518 = vmatmul.mubr.f32.gmra.mrb[0].mxu0 %v1440
      %v1519 = vpop.f32.mrb[0].mxu0
      %v1520 = vadd.f32 0.0, %v1519
      %v1521 = vpop.f32.mrb[0].mxu0
      %1522 = vmatprep.mubr.f32.mxu0 0.0
      %1523 = vmatmul.mubr.f32.gmra.mrb[0].mxu0 %v1443
      %v1524 = vpop.f32.mrb[0].mxu0
      %v1525 = vadd.f32 0.0, %v1524
      %v1526 = vpop.f32.mrb[0].mxu0
      %1527 = vmatprep.mubr.f32.mxu0 0.0
      %1528 = vmatmul.mubr.f32.gmra.mrb[0].mxu0 %v1446
      %v1529 = vpop.f32.mrb[0].mxu0
      %v1530 = vadd.f32 0.0, %v1529
      %v1531 = vpop.f32.mrb[0].mxu0
      %1532 = vdwg.mxu0
      %v1533 = vadd.f32 %v1401, %v1515
      %v1534 = vadd.f32 %v1406, %v1520
      %v1535 = vadd.f32 %v1411, %v1525
      %v1536 = vadd.f32 %v1416, %v1530
      %v1537 = vld [vmem:[%s7] sm:$0xff]
      %v1538 = vld [vmem:[%s7 + $0x8] sm:$0xff]
      %v1539 = vld [vmem:[%s7 + $0x10] sm:$0xff]
      %v1540 = vld [vmem:[%s7 + $0x18] sm:$0xff]
      %1542 = vset.pattern.permute.xlu0 0
      %1543 = vperm.xlu0 %1542, %v1537
      %v1544 = vpop.permute.xlu0 %1543
      %1547 = vset.pattern.permute.xlu0 0
      %1548 = vperm.xlu0 %1547, %v1538
      %v1549 = vpop.permute.xlu0 %1548
      %1552 = vset.pattern.permute.xlu0 0
      %1553 = vperm.xlu0 %1552, %v1539
      %v1554 = vpop.permute.xlu0 %1553
      %1557 = vset.pattern.permute.xlu0 0
      %1558 = vperm.xlu0 %1557, %v1540
      %v1559 = vpop.permute.xlu0 %1558
      %v1561 = vadd.f32 %v1533, %v1544
      %v1562 = vadd.f32 %v1534, %v1549
      %v1563 = vadd.f32 %v1535, %v1554
      %v1564 = vadd.f32 %v1536, %v1559
      %v1565 = vmul.f32 %v1561, %v424
      %v1566 = vmul.f32 %v1562, %v424
      %v1567 = vmul.f32 %v1563, %v424
      %v1568 = vmul.f32 %v1564, %v424
      %v1569 = vsel %vm825, %v1565, 0.0
      %1570 = vadd.xlane.f32.xlu0 %v1569
      %v1571 = vpop.xlane.xlu0 %1570
      %v1572 = vsel %vm825, %v1566, 0.0
      %1573 = vadd.xlane.f32.xlu0 %v1572
      %v1574 = vpop.xlane.xlu0 %1573
      %v1575 = vsel %vm825, %v1567, 0.0
      %1576 = vadd.xlane.f32.xlu0 %v1575
      %v1577 = vpop.xlane.xlu0 %1576
      %v1578 = vsel %vm825, %v1568, 0.0
      %1579 = vadd.xlane.f32.xlu0 %v1578
      %v1580 = vpop.xlane.xlu0 %1579
      %1581 = vmatprep.subr.mxu0 0.0
      %1582 = vmatpush1.msra.mxu0 %v1571
      %1583 = vmatprep.subr.mxu0 0.0
      %1584 = vmatpush1.msra.mxu0 %v1574
      %1585 = vmatprep.subr.mxu0 0.0
      %1586 = vmatpush1.msra.mxu0 %v1577
      %1587 = vmatprep.subr.mxu0 0.0
      %1588 = vmatpush1.msra.mxu0 %v1580
      %1589 = vmatprep.subr.mxu0 0.0
      %1590 = vmatpush1.msra.mxu0 0.0
      %1591 = vmatprep.subr.mxu0 0.0
      %1592 = vmatpush1.msra.mxu0 0.0
      %1593 = vmatprep.subr.mxu0 0.0
      %1594 = vmatpush1.msra.mxu0 0.0
      %1595 = vmatprep.subr.mxu0 0.0
      %1596 = vmatpush1.msra.mxu0 0.0
      %1597 = vmatprep.subr.mxu0 0.0
      %1598 = vmatpush1.msra.mxu0 0.0
      %1599 = vmatprep.subr.mxu0 0.0
      %1600 = vmatpush1.msra.mxu0 0.0
      %1601 = vmatprep.subr.mxu0 0.0
      %1602 = vmatpush1.msra.mxu0 0.0
      %1603 = vmatprep.subr.mxu0 0.0
      %1604 = vmatpush1.msra.mxu0 0.0
      %1605 = vmatprep.subr.mxu0 0.0
      %1606 = vmatpush1.msra.mxu0 0.0
      %1607 = vmatprep.subr.mxu0 0.0
      %1608 = vmatpush1.msra.mxu0 0.0
      %1609 = vmatprep.subr.mxu0 0.0
      %1610 = vmatpush1.msra.mxu0 0.0
      %1611 = vmatprep.subr.mxu0 0.0
      %1612 = vmatpush1.msra.mxu0 0.0
      %1613 = vmatprep.subr.mxu0 0.0
      %1614 = vmatpush1.msra.mxu0 0.0
      %1615 = vmatprep.subr.mxu0 0.0
      %1616 = vmatpush1.msra.mxu0 0.0
      %1617 = vmatprep.subr.mxu0 0.0
      %1618 = vmatpush1.msra.mxu0 0.0
      %1619 = vmatprep.subr.mxu0 0.0
      %1620 = vmatpush1.msra.mxu0 0.0
      %1621 = vmatprep.subr.mxu0 0.0
      %1622 = vmatpush1.msra.mxu0 0.0
      %1623 = vmatprep.subr.mxu0 0.0
      %1624 = vmatpush1.msra.mxu0 0.0
      %1625 = vmatprep.subr.mxu0 0.0
      %1626 = vmatpush1.msra.mxu0 0.0
      %1627 = vmatprep.subr.mxu0 0.0
      %1628 = vmatpush1.msra.mxu0 0.0
      %1629 = vmatprep.subr.mxu0 0.0
      %1630 = vmatpush1.msra.mxu0 0.0
      %1631 = vmatprep.subr.mxu0 0.0
      %1632 = vmatpush1.msra.mxu0 0.0
      %1633 = vmatprep.subr.mxu0 0.0
      %1634 = vmatpush1.msra.mxu0 0.0
      %1635 = vmatprep.subr.mxu0 0.0
      %1636 = vmatpush1.msra.mxu0 0.0
      %1637 = vmatprep.subr.mxu0 0.0
      %1638 = vmatpush1.msra.mxu0 0.0
      %1639 = vmatprep.subr.mxu0 0.0
      %1640 = vmatpush1.msra.mxu0 0.0
      %1641 = vmatprep.subr.mxu0 0.0
      %1642 = vmatpush1.msra.mxu0 0.0
      %1643 = vmatprep.subr.mxu0 0.0
      %1644 = vmatpush1.msra.mxu0 0.0
      %1645 = vmatprep.mubr.f32.mxu0 0.0
      %1646 = vmatmul.mubr.f32.gmra.mrb[0].mxu0 %v839
      %v1647 = vpop.f32.mrb[0].mxu0
      %v1648 = vadd.f32 0.0, %v1647
      %v1649 = vpop.f32.mrb[0].mxu0
      %1650 = vmatprep.mubr.f32.mxu0 0.0
      %1651 = vmatmul.mubr.f32.gmra.mrb[0].mxu0 %v842
      %v1652 = vpop.f32.mrb[0].mxu0
      %v1653 = vadd.f32 0.0, %v1652
      %v1654 = vpop.f32.mrb[0].mxu0
      %1655 = vmatprep.mubr.f32.mxu0 0.0
      %1656 = vmatmul.mubr.f32.gmra.mrb[0].mxu0 %v845
      %v1657 = vpop.f32.mrb[0].mxu0
      %v1658 = vadd.f32 0.0, %v1657
      %v1659 = vpop.f32.mrb[0].mxu0
      %1660 = vmatprep.mubr.f32.mxu0 0.0
      %1661 = vmatmul.mubr.f32.gmra.mrb[0].mxu0 %v848
      %v1662 = vpop.f32.mrb[0].mxu0
      %v1663 = vadd.f32 0.0, %v1662
      %v1664 = vpop.f32.mrb[0].mxu0
      %1665 = vdwg.mxu0
      %1667 = vset.pattern.permute.xlu0 0
      %1668 = vperm.xlu0 %1667, %v1648
      %v1669 = vpop.permute.xlu0 %1668
      %1672 = vset.pattern.permute.xlu0 0
      %1673 = vperm.xlu0 %1672, %v1653
      %v1674 = vpop.permute.xlu0 %1673
      %1677 = vset.pattern.permute.xlu0 0
      %1678 = vperm.xlu0 %1677, %v1658
      %v1679 = vpop.permute.xlu0 %1678
      %1682 = vset.pattern.permute.xlu0 0
      %1683 = vperm.xlu0 %1682, %v1663
      %v1684 = vpop.permute.xlu0 %1683
      %v1686 = vsub.f32 %v1565, %v1669
      %v1687 = vsub.f32 %v1566, %v1674
      %v1688 = vsub.f32 %v1567, %v1679
      %v1689 = vsub.f32 %v1568, %v1684
      %v1690 = vmul.f32 %v1686, %v1686
      %v1691 = vmul.f32 %v1687, %v1687
      %v1692 = vmul.f32 %v1688, %v1688
      %v1693 = vmul.f32 %v1689, %v1689
      %v1694 = vsel %vm825, %v1690, 0.0
      %1695 = vadd.xlane.f32.xlu0 %v1694
      %v1696 = vpop.xlane.xlu0 %1695
      %v1697 = vsel %vm825, %v1691, 0.0
      %1698 = vadd.xlane.f32.xlu0 %v1697
      %v1699 = vpop.xlane.xlu0 %1698
      %v1700 = vsel %vm825, %v1692, 0.0
      %1701 = vadd.xlane.f32.xlu0 %v1700
      %v1702 = vpop.xlane.xlu0 %1701
      %v1703 = vsel %vm825, %v1693, 0.0
      %1704 = vadd.xlane.f32.xlu0 %v1703
      %v1705 = vpop.xlane.xlu0 %1704
      %1706 = vmatprep.subr.mxu0 0.0
      %1707 = vmatpush1.msra.mxu0 %v1696
      %1708 = vmatprep.subr.mxu0 0.0
      %1709 = vmatpush1.msra.mxu0 %v1699
      %1710 = vmatprep.subr.mxu0 0.0
      %1711 = vmatpush1.msra.mxu0 %v1702
      %1712 = vmatprep.subr.mxu0 0.0
      %1713 = vmatpush1.msra.mxu0 %v1705
      %1714 = vmatprep.subr.mxu0 0.0
      %1715 = vmatpush1.msra.mxu0 0.0
      %1716 = vmatprep.subr.mxu0 0.0
      %1717 = vmatpush1.msra.mxu0 0.0
      %1718 = vmatprep.subr.mxu0 0.0
      %1719 = vmatpush1.msra.mxu0 0.0
      %1720 = vmatprep.subr.mxu0 0.0
      %1721 = vmatpush1.msra.mxu0 0.0
      %1722 = vmatprep.subr.mxu0 0.0
      %1723 = vmatpush1.msra.mxu0 0.0
      %1724 = vmatprep.subr.mxu0 0.0
      %1725 = vmatpush1.msra.mxu0 0.0
      %1726 = vmatprep.subr.mxu0 0.0
      %1727 = vmatpush1.msra.mxu0 0.0
      %1728 = vmatprep.subr.mxu0 0.0
      %1729 = vmatpush1.msra.mxu0 0.0
      %1730 = vmatprep.subr.mxu0 0.0
      %1731 = vmatpush1.msra.mxu0 0.0
      %1732 = vmatprep.subr.mxu0 0.0
      %1733 = vmatpush1.msra.mxu0 0.0
      %1734 = vmatprep.subr.mxu0 0.0
      %1735 = vmatpush1.msra.mxu0 0.0
      %1736 = vmatprep.subr.mxu0 0.0
      %1737 = vmatpush1.msra.mxu0 0.0
      %1738 = vmatprep.subr.mxu0 0.0
      %1739 = vmatpush1.msra.mxu0 0.0
      %1740 = vmatprep.subr.mxu0 0.0
      %1741 = vmatpush1.msra.mxu0 0.0
      %1742 = vmatprep.subr.mxu0 0.0
      %1743 = vmatpush1.msra.mxu0 0.0
      %1744 = vmatprep.subr.mxu0 0.0
      %1745 = vmatpush1.msra.mxu0 0.0
      %1746 = vmatprep.subr.mxu0 0.0
      %1747 = vmatpush1.msra.mxu0 0.0
      %1748 = vmatprep.subr.mxu0 0.0
      %1749 = vmatpush1.msra.mxu0 0.0
      %1750 = vmatprep.subr.mxu0 0.0
      %1751 = vmatpush1.msra.mxu0 0.0
      %1752 = vmatprep.subr.mxu0 0.0
      %1753 = vmatpush1.msra.mxu0 0.0
      %1754 = vmatprep.subr.mxu0 0.0
      %1755 = vmatpush1.msra.mxu0 0.0
      %1756 = vmatprep.subr.mxu0 0.0
      %1757 = vmatpush1.msra.mxu0 0.0
      %1758 = vmatprep.subr.mxu0 0.0
      %1759 = vmatpush1.msra.mxu0 0.0
      %1760 = vmatprep.subr.mxu0 0.0
      %1761 = vmatpush1.msra.mxu0 0.0
      %1762 = vmatprep.subr.mxu0 0.0
      %1763 = vmatpush1.msra.mxu0 0.0
      %1764 = vmatprep.subr.mxu0 0.0
      %1765 = vmatpush1.msra.mxu0 0.0
      %1766 = vmatprep.subr.mxu0 0.0
      %1767 = vmatpush1.msra.mxu0 0.0
      %1768 = vmatprep.subr.mxu0 0.0
      %1769 = vmatpush1.msra.mxu0 0.0
      %1770 = vmatprep.mubr.f32.mxu0 0.0
      %1771 = vmatmul.mubr.f32.gmra.mrb[0].mxu0 %v839
      %v1772 = vpop.f32.mrb[0].mxu0
      %v1773 = vadd.f32 1e-05, %v1772
      %v1774 = vpop.f32.mrb[0].mxu0
      %1775 = vmatprep.mubr.f32.mxu0 0.0
      %1776 = vmatmul.mubr.f32.gmra.mrb[0].mxu0 %v842
      %v1777 = vpop.f32.mrb[0].mxu0
      %v1778 = vadd.f32 1e-05, %v1777
      %v1779 = vpop.f32.mrb[0].mxu0
      %1780 = vmatprep.mubr.f32.mxu0 0.0
      %1781 = vmatmul.mubr.f32.gmra.mrb[0].mxu0 %v845
      %v1782 = vpop.f32.mrb[0].mxu0
      %v1783 = vadd.f32 1e-05, %v1782
      %v1784 = vpop.f32.mrb[0].mxu0
      %1785 = vmatprep.mubr.f32.mxu0 0.0
      %1786 = vmatmul.mubr.f32.gmra.mrb[0].mxu0 %v848
      %v1787 = vpop.f32.mrb[0].mxu0
      %v1788 = vadd.f32 1e-05, %v1787
      %v1789 = vpop.f32.mrb[0].mxu0
      %1790 = vdwg.mxu0
      %v1791 = vrsqrt.pop %v1773
      %v1792 = vrsqrt.pop %v1778
      %v1793 = vrsqrt.pop %v1783
      %v1794 = vrsqrt.pop %v1788
      %1796 = vset.pattern.permute.xlu0 0
      %1797 = vperm.xlu0 %1796, %v1791
      %v1798 = vpop.permute.xlu0 %1797
      %1801 = vset.pattern.permute.xlu0 0
      %1802 = vperm.xlu0 %1801, %v1792
      %v1803 = vpop.permute.xlu0 %1802
      %1806 = vset.pattern.permute.xlu0 0
      %1807 = vperm.xlu0 %1806, %v1793
      %v1808 = vpop.permute.xlu0 %1807
      %1811 = vset.pattern.permute.xlu0 0
      %1812 = vperm.xlu0 %1811, %v1794
      %v1813 = vpop.permute.xlu0 %1812
      %v1815 = vmul.f32 %v1686, %v1798
      %v1816 = vmul.f32 %v1687, %v1803
      %v1817 = vmul.f32 %v1688, %v1808
      %v1818 = vmul.f32 %v1689, %v1813
      %v1819 = vld [vmem:[%s8] sm:$0xff]
      %v1820 = vld [vmem:[%s8 + $0x8] sm:$0xff]
      %v1821 = vld [vmem:[%s8 + $0x10] sm:$0xff]
      %v1822 = vld [vmem:[%s8 + $0x18] sm:$0xff]
      %1824 = vset.pattern.permute.xlu0 0
      %1825 = vperm.xlu0 %1824, %v1819
      %v1826 = vpop.permute.xlu0 %1825
      %1829 = vset.pattern.permute.xlu0 0
      %1830 = vperm.xlu0 %1829, %v1820
      %v1831 = vpop.permute.xlu0 %1830
      %1834 = vset.pattern.permute.xlu0 0
      %1835 = vperm.xlu0 %1834, %v1821
      %v1836 = vpop.permute.xlu0 %1835
      %1839 = vset.pattern.permute.xlu0 0
      %1840 = vperm.xlu0 %1839, %v1822
      %v1841 = vpop.permute.xlu0 %1840
      %v1843 = vmul.f32 %v1815, %v1826
      %v1844 = vmul.f32 %v1816, %v1831
      %v1845 = vmul.f32 %v1817, %v1836
      %v1846 = vmul.f32 %v1818, %v1841
      %v1847 = vld [vmem:[%s9] sm:$0xff]
      %v1848 = vld [vmem:[%s9 + $0x8] sm:$0xff]
      %v1849 = vld [vmem:[%s9 + $0x10] sm:$0xff]
      %v1850 = vld [vmem:[%s9 + $0x18] sm:$0xff]
      %1852 = vset.pattern.permute.xlu0 0
      %1853 = vperm.xlu0 %1852, %v1847
      %v1854 = vpop.permute.xlu0 %1853
      %1857 = vset.pattern.permute.xlu0 0
      %1858 = vperm.xlu0 %1857, %v1848
      %v1859 = vpop.permute.xlu0 %1858
      %1862 = vset.pattern.permute.xlu0 0
      %1863 = vperm.xlu0 %1862, %v1849
      %v1864 = vpop.permute.xlu0 %1863
      %1867 = vset.pattern.permute.xlu0 0
      %1868 = vperm.xlu0 %1867, %v1850
      %v1869 = vpop.permute.xlu0 %1868
      %v1871 = vadd.f32 %v1843, %v1854
      %v1872 = vadd.f32 %v1844, %v1859
      %v1873 = vadd.f32 %v1845, %v1864
      %v1874 = vadd.f32 %v1846, %v1869
      %v1875 = vxor.u32 %v1871, 2147483648
      %v1876 = vxor.u32 %v1872, 2147483648
      %v1877 = vxor.u32 %v1873, 2147483648
      %v1878 = vxor.u32 %v1874, 2147483648
      %v1879 = vmul.f32 %v1875, 1.442695
      %v1880 = vpow.pop %v1879
      %v1881 = vmul.f32 %v1876, 1.442695
      %v1882 = vpow.pop %v1881
      %v1883 = vmul.f32 %v1877, 1.442695
      %v1884 = vpow.pop %v1883
      %v1885 = vmul.f32 %v1878, 1.442695
      %v1886 = vpow.pop %v1885
      %v1887 = vadd.f32 %v1880, 1.0
      %v1888 = vadd.f32 %v1882, 1.0
      %v1889 = vadd.f32 %v1884, 1.0
      %v1890 = vadd.f32 %v1886, 1.0
      %v1891 = vrcp.pop %v1887
      %v1892 = vmul.f32 1.0, %v1891
      %v1893 = vrcp.pop %v1888
      %v1894 = vmul.f32 1.0, %v1893
      %v1895 = vrcp.pop %v1889
      %v1896 = vmul.f32 1.0, %v1895
      %v1897 = vrcp.pop %v1890
      %v1898 = vmul.f32 1.0, %v1897
      %v1899 = vmul.f32 %v1871, %v1892
      %v1900 = vmul.f32 %v1872, %v1894
      %v1901 = vmul.f32 %v1873, %v1896
      %v1902 = vmul.f32 %v1874, %v1898
      %v1903 = vadd.f32 %v1899, %v401
      %v1904 = vadd.f32 %v1900, %v402
      %v1905 = vadd.f32 %v1901, %v403
      %v1906 = vadd.f32 %v1902, %v404
      %1907 = vst.msk [vmem:[%s400] sm:$0xff] %vm825, %v1903
      %1908 = vst.msk [vmem:[%s400 + $0x8] sm:$0xff] %vm825, %v1904
      %1909 = vst.msk [vmem:[%s400 + $0x10] sm:$0xff] %vm825, %v1905
      %1910 = vst.msk [vmem:[%s400 + $0x18] sm:$0xff] %vm825, %v1906
      %p1911 = scmp.lt.s32.totalorder %s22, 1
      %s1912 = scalar_select %p1911, %s22, 1
      %s1913 = smul.addr %s1912, 4
      %s1914 = smul.addr %s1913, 8
      %s1915 = scalar_lea.vmem %s11, %s1914
      // Predicated region
      $region65: #{resnet_block.1} parent=63 // pred_check
        %p1916 = pneg %p281
      $region66: #{resnet_block.1} parent=63 // pred_check_branch
        %1918 = sbr.rel (%p1916) target = $region68
      $region67: #{resnet_block.1} parent=63 // pred_region
        _
      $region68: #{resnet_block.1} parent=63 // pred_fallthru
        _
    $region64: #{resnet_block.1} parent=5 // pred_fallthru
      _
    %p1919 = scmp.le.s32.totalorder 2, %s17
    // Predicated region
    $region69: #{resnet_block.1} parent=5 // pred_check
      %p1920 = pneg %p1919
    $region70: #{resnet_block.1} parent=5 // pred_check_branch
      %1922 = sbr.rel (%p1920) target = $region72
    $region71: #{resnet_block.1} parent=5 // pred_region
      %s1923 = ssub.s32 %s17, 2
      // Predicated region
      $region73: #{resnet_block.1} parent=71 // pred_check
        %p1924 = pneg %p287
      $region74: #{resnet_block.1} parent=71 // pred_check_branch
        %1926 = sbr.rel (%p1924) target = $region76
      $region75: #{resnet_block.1} parent=71 // pred_region
        %p1927 = scmp.lt.s32.totalorder %s23, 1
        %s1928 = scalar_select %p1927, %s23, 1
        %s1929 = smul.addr %s1928, 4
        %s1930 = smul.addr %s1929, 8
        %s1931 = scalar_lea.vmem %s11, %s1930
      $region76: #{resnet_block.1} parent=71 // pred_fallthru
        _
    $region72: #{resnet_block.1} parent=5 // pred_fallthru
      _
  $region6: #{resnet_block.1} parent=0 // loop_footer
    %s21 = sadd.s32 1, %s17
  $region7: #{resnet_block.1} parent=0 // loop_footer_branch
    %16 = sbr.rel target = $region3
  $region8: #{resnet_block.1} parent=0 // loop_exit
    _

</llo_original>
